<compile_context>
chip_gen: v7x
topology: tpu7x:2x2x1
jax: 0.10.0
libtpu: 0.0.40
codegen_flags: <defaults>
</compile_context>

<pallas_src>
import functools

import jax
import jax.numpy as jnp
from jax import lax
from jax.experimental import pallas as pl
from jax.experimental.pallas import tpu as pltpu


def _round_up(x, m):
    return ((x + m - 1) // m) * m


# ----------------------------------------------------------------------------
# Fused Pallas kernel
# ----------------------------------------------------------------------------
def _conad_fused_kernel(
    adj_hbm, x_ref, w_ref, wdec1_ref, b_ref, bdec1_ref,      # inputs
    xout_ref, sout_ref,                                      # outputs
    adj_vmem, hstruct_vmem, dma_sems,                        # scratch
    *, enc0_act, enc_tail, attr_tail, struct_tail,
    attr0_act, struct0_act, fuse_dec1,
    n_chunks, chunk_rows, tile_s, f_pad,
):
    i = pl.program_id(0)
    cd = x_ref.dtype  # bf16 compute dtype for MXU operands

    # ------------------------------------------------------------------
    # Grid step 0: run the whole GCN stack once (adjacency streamed in).
    # ------------------------------------------------------------------
    @pl.when(i == 0)
    def _first_step():
        def adj_chunk_copy(c):
            rows = pl.ds(c * chunk_rows, chunk_rows)
            return pltpu.make_async_copy(
                adj_hbm.at[rows, :], adj_vmem.at[rows, :], dma_sems.at[c])

        # Kick off the first adjacency chunk, then do adjacency-independent
        # work (x @ W_enc0) while it is in flight.
        adj_chunk_copy(0).start()
        x = x_ref[...]
        xw0 = jnp.dot(x, w_ref[0],
                      preferred_element_type=jnp.float32).astype(cd)
        b0 = b_ref[pl.ds(0, 1), :]

        # Encoder layer 0, computed chunk-by-chunk as adjacency rows land;
        # chunk c's MXU work hides chunk c+1's DMA.
        for c in range(n_chunks):
            adj_chunk_copy(c).wait()
            if c + 1 < n_chunks:
                adj_chunk_copy(c + 1).start()
            rows = pl.ds(c * chunk_rows, chunk_rows)
            h_blk = jnp.dot(adj_vmem[rows, :], xw0,
                            preferred_element_type=jnp.float32) + b0
            if enc0_act:
                h_blk = jnp.maximum(h_blk, 0.0)
            hstruct_vmem[rows, :] = h_blk.astype(cd)

        adj = adj_vmem[...]   # full normalized adjacency now resident

        def gcn_tail(h_in, h_in_f32, sched):
            """Remaining GCNConv layers: Ahat @ (h @ W) + b (+ ReLU)."""
            h, out = h_in, h_in_f32
            for (idx, act) in sched:
                t = jnp.dot(h, w_ref[idx], preferred_element_type=jnp.float32)
                out = jnp.dot(adj, t.astype(cd),
                              preferred_element_type=jnp.float32)
                out = out + b_ref[pl.ds(idx, 1), :]
                if act:
                    out = jnp.maximum(out, 0.0)
                h = out.astype(cd)
            return out, h

        h1 = hstruct_vmem[...]
        _, h_enc = gcn_tail(h1, h1.astype(jnp.float32), enc_tail)

        if fuse_dec1:
            # attr-decoder layer 1 and struct-decoder layer 1 both read h_enc:
            # one 2*f_pad-wide matmul (full 256-lane MXU output width).
            tw = jnp.dot(h_enc, wdec1_ref[...],
                         preferred_element_type=jnp.float32)
            wide = jnp.dot(adj, tw.astype(cd),
                           preferred_element_type=jnp.float32)
            wide = wide + bdec1_ref[...]
            a_f32 = wide[:, :f_pad]
            s_f32 = wide[:, f_pad:]
            if attr0_act:
                a_f32 = jnp.maximum(a_f32, 0.0)
            if struct0_act:
                s_f32 = jnp.maximum(s_f32, 0.0)
            attr_h, struct_h = a_f32.astype(cd), s_f32.astype(cd)
        else:
            a_f32 = h_enc.astype(jnp.float32)
            s_f32 = a_f32
            attr_h = struct_h = h_enc

        # attribute reconstruction (f32 result kept for the HBM store)
        x_rec_f32, _ = gcn_tail(attr_h, a_f32, attr_tail)
        xout_ref[...] = x_rec_f32.astype(xout_ref.dtype)

        # structure embedding, kept in VMEM for the tiled gram below
        _, h_s = gcn_tail(struct_h, s_f32, struct_tail)
        hstruct_vmem[...] = h_s

    # ------------------------------------------------------------------
    # Every grid step: one row tile of s = h_struct @ h_struct.T, streamed
    # out in bf16 (pipelined output writeback overlaps the next tile).
    # ------------------------------------------------------------------
    row0 = pl.multiple_of(i * tile_s, tile_s)
    hs_rows = hstruct_vmem[pl.ds(row0, tile_s), :]
    s_tile = lax.dot_general(
        hs_rows, hstruct_vmem[...],
        dimension_numbers=(((1,), (1,)), ((), ())),
        preferred_element_type=jnp.float32)
    sout_ref[...] = s_tile.astype(sout_ref.dtype)


# ----------------------------------------------------------------------------
# Adjacency precompute (done ONCE, outside the per-forward path)
# ----------------------------------------------------------------------------
def precompute_adjacency(edge_index, num_nodes, n_pad):
    """Ahat = D^-1/2 (A + I) D^-1/2 with PyG gcn_norm semantics (duplicate
    non-self-loop edges sum; exactly one weight-1 self loop per node),
    zero-padded to (n_pad, n_pad) and cast to bf16 for lane-dense MXU use."""
    src, dst = edge_index[0], edge_index[1]
    off_diag = (src != dst).astype(jnp.float32)
    a = jnp.zeros((num_nodes, num_nodes), jnp.float32)
    a = a.at[dst, src].add(off_diag)                    # messages src -> dst
    a = a + jnp.eye(num_nodes, dtype=jnp.float32)       # weight-1 self loops
    deg = jnp.sum(a, axis=1)
    d = jnp.where(deg > 0.0, lax.rsqrt(deg), 0.0)
    a = a * d[:, None] * d[None, :]
    a = jnp.pad(a, ((0, n_pad - num_nodes), (0, n_pad - num_nodes)))
    return a.astype(jnp.bfloat16)


# ----------------------------------------------------------------------------
# Parameter init (mirrors torch_geometric.nn.GCN / BasicGNN)
# ----------------------------------------------------------------------------
def glorot(key, fan_in, fan_out):
    limit = jnp.sqrt(6.0 / (fan_in + fan_out))
    return jax.random.uniform(
        key, (fan_in, fan_out), jnp.float32, minval=-limit, maxval=limit)


def init_gcn_params(key, in_ch, hid_ch, out_ch, num_layers):
    if num_layers == 1:
        dims = [(in_ch, out_ch)]
    else:
        dims = [(in_ch, hid_ch)]
        dims += [(hid_ch, hid_ch)] * (num_layers - 2)
        dims += [(hid_ch, out_ch)]
    params = []
    for (fi, fo) in dims:
        key, wk = jax.random.split(key)
        params.append((glorot(wk, fi, fo), jnp.zeros((fo,), jnp.float32)))
    return params, key


# ----------------------------------------------------------------------------
# Forward wrapper
# ----------------------------------------------------------------------------
def conad_forward(params, x, adj_p):
    n, in_dim = x.shape
    n_pad = adj_p.shape[0]
    assert n_pad % 128 == 0

    enc = params["shared_encoder"]
    attr = params["attr_decoder"]
    struct_dec = params["struct_decoder"]

    f_dims = [in_dim]
    for stack in (enc, attr, struct_dec):
        for (w, _) in stack:
            f_dims += [w.shape[0], w.shape[1]]
    # Keep f_pad at 128 for the reference hyper-params (v5e MXU is exactly
    # matched by Fp=128; wider decoder work comes from the fused 2*f_pad pass).
    f_pad = _round_up(max(f_dims + [128]), 128)

    # ----- static layer schedules + packed weight/bias slabs -----
    fuse_dec1 = len(attr) >= 1 and len(struct_dec) >= 1

    slab_w, slab_b = [], []

    def push(w, b):
        slab_w.append(w)
        slab_b.append(b)
        return len(slab_w) - 1

    enc_flags = [i < len(enc) - 1 for i in range(len(enc))]
    attr_flags = [i < len(attr) - 1 for i in range(len(attr))]
    struct_flags = [i < len(struct_dec) - 1 for i in range(len(struct_dec))]

    push(*enc[0])                       # encoder layer 0 lives at slab index 0
    enc0_act = enc_flags[0]
    enc_tail = tuple((push(*enc[i]), enc_flags[i]) for i in range(1, len(enc)))

    if fuse_dec1:
        attr0_act, struct0_act = attr_flags[0], struct_flags[0]
        attr_tail = tuple((push(*attr[i]), attr_flags[i])
                          for i in range(1, len(attr)))
        struct_tail = tuple((push(*struct_dec[i]), struct_flags[i])
                            for i in range(1, len(struct_dec)))
    else:
        attr0_act = struct0_act = False
        attr_tail = tuple((push(*attr[i]), attr_flags[i])
                          for i in range(len(attr)))
        struct_tail = tuple((push(*struct_dec[i]), struct_flags[i])
                            for i in range(len(struct_dec)))

    n_slab = len(slab_w)
    w_slab = jnp.zeros((n_slab, f_pad, f_pad), jnp.float32)
    b_slab = jnp.zeros((n_slab, f_pad), jnp.float32)       # 2-D: one VMEM tile
    for idx, (w, b) in enumerate(zip(slab_w, slab_b)):
        w_slab = w_slab.at[idx, : w.shape[0], : w.shape[1]].set(w)
        b_slab = b_slab.at[idx, : b.shape[0]].set(b)
    w_slab = w_slab.astype(jnp.bfloat16)

    # fused decoder-layer-1 weight/bias: [W_attr0 | W_struct0], 2*f_pad wide
    w_dec1 = jnp.zeros((f_pad, 2 * f_pad), jnp.float32)
    b_dec1 = jnp.zeros((1, 2 * f_pad), jnp.float32)
    if fuse_dec1:
        wa, ba = attr[0]
        ws, bs = struct_dec[0]
        w_dec1 = w_dec1.at[: wa.shape[0], : wa.shape[1]].set(wa)
        w_dec1 = w_dec1.at[: ws.shape[0], f_pad:f_pad + ws.shape[1]].set(ws)
        b_dec1 = b_dec1.at[0, : ba.shape[0]].set(ba)
        b_dec1 = b_dec1.at[0, f_pad:f_pad + bs.shape[0]].set(bs)
    w_dec1 = w_dec1.astype(jnp.bfloat16)

    # ----- tiling: big (>=512 row) chunks for the adj DMA and the s stream -----
    if n_pad <= 512:
        tile_s = n_pad
    else:
        tile_s = next(t for t in (512, 256, 128) if n_pad % t == 0)
    n_blocks = n_pad // tile_s
    chunk_rows = tile_s
    n_chunks = n_pad // chunk_rows

    x_p = jnp.pad(x, ((0, n_pad - n), (0, f_pad - in_dim))).astype(jnp.bfloat16)

    # ----- explicit VMEM budget (scoped default is only 16/32 MiB) -----
    vmem_bytes = (
        2 * n_pad * n_pad                          # adjacency scratch (bf16)
        + 2 * 2 * tile_s * n_pad                   # s tile out, double buffered
        + 2 * n_pad * f_pad * 3                    # x input + h_struct scratch
        + 4 * n_pad * f_pad * 2                    # x_rec f32 output buffer
        + 2 * n_slab * f_pad * f_pad               # weight slab
        + 4 * f_pad * 2 * f_pad + 8 * n_slab * f_pad
        + 14 * n_pad * f_pad * 4                   # live f32 temporaries
        + (2 << 20))
    vmem_limit = int(min(max(vmem_bytes, 32 << 20), 128 << 20))

    # advisory cost hint
    flops = (2 * n_pad * f_pad * f_pad + 2 * n_pad * n_pad * f_pad) * n_slab
    if fuse_dec1:
        flops += 2 * n_pad * f_pad * 2 * f_pad + 2 * n_pad * n_pad * 2 * f_pad
    flops += 2 * n_pad * n_pad * f_pad             # gram
    bytes_accessed = (adj_p.size * 2 + x_p.size * 2 + w_slab.size * 2
                      + w_dec1.size * 2 + b_slab.size * 4 + b_dec1.size * 4
                      + n_pad * f_pad * 4 + n_pad * n_pad * 2)

    grid_spec = pltpu.PrefetchScalarGridSpec(
        num_scalar_prefetch=0,
        grid=(n_blocks,),
        in_specs=[
            pl.BlockSpec(memory_space=pl.ANY),                          # adj (HBM)
            pl.BlockSpec((n_pad, f_pad), lambda i: (0, 0)),             # x
            pl.BlockSpec((n_slab, f_pad, f_pad), lambda i: (0, 0, 0)),  # W slab
            pl.BlockSpec((f_pad, 2 * f_pad), lambda i: (0, 0)),         # W dec1
            pl.BlockSpec((n_slab, f_pad), lambda i: (0, 0)),            # b slab
            pl.BlockSpec((1, 2 * f_pad), lambda i: (0, 0)),             # b dec1
        ],
        out_specs=(
            pl.BlockSpec((n_pad, f_pad), lambda i: (0, 0)),             # x_rec
            pl.BlockSpec((tile_s, n_pad), lambda i: (i, 0)),            # s tiles
        ),
        scratch_shapes=[
            pltpu.VMEM((n_pad, n_pad), jnp.bfloat16),   # adjacency (resident)
            pltpu.VMEM((n_pad, f_pad), jnp.bfloat16),   # layer-0 / h_struct
            pltpu.SemaphoreType.DMA((n_chunks,)),
        ],
    )

    kernel = functools.partial(
        _conad_fused_kernel,
        enc0_act=enc0_act, enc_tail=enc_tail,
        attr_tail=attr_tail, struct_tail=struct_tail,
        attr0_act=attr0_act, struct0_act=struct0_act, fuse_dec1=fuse_dec1,
        n_chunks=n_chunks, chunk_rows=chunk_rows, tile_s=tile_s, f_pad=f_pad)

    x_out_p, s_out_p = pl.pallas_call(
        kernel,
        out_shape=(jax.ShapeDtypeStruct((n_pad, f_pad), jnp.float32),
                   jax.ShapeDtypeStruct((n_pad, n_pad), jnp.bfloat16)),
        grid_spec=grid_spec,
        compiler_params=pltpu.CompilerParams(
            dimension_semantics=("arbitrary",),
            vmem_limit_bytes=vmem_limit),
        cost_estimate=pl.CostEstimate(flops=flops, transcendentals=0,
                                      bytes_accessed=bytes_accessed),
    )(adj_p, x_p, w_slab, w_dec1, b_slab, b_dec1)

    attr_out_dim = params["attr_decoder"][-1][0].shape[1]
    # s_ is returned in bf16 (halves the dominant HBM write; ~1e-2 rel drift).
    return x_out_p[:n, :attr_out_dim], s_out_p[:n, :n]


# ----------------------------------------------------------------------------
# Main
# ----------------------------------------------------------------------------
if __name__ == "__main__":
    # Module hyper-params (small, consistent with CONADBase.__init__)
    in_dim = 16
    hid_dim = 32
    num_layers = 4
    decoder_layers = num_layers // 2              # 2
    encoder_layers = num_layers - decoder_layers  # 2

    N = 64          # number of graph nodes
    E = 256         # number of (directed) random edges

    key = jax.random.PRNGKey(0)

    enc_params, key = init_gcn_params(key, in_dim, hid_dim, hid_dim,
                                      encoder_layers)
    attr_params, key = init_gcn_params(key, hid_dim, hid_dim, in_dim,
                                       decoder_layers)
    struct_params, key = init_gcn_params(key, hid_dim, hid_dim, in_dim,
                                         decoder_layers - 1)
    params = {
        "shared_encoder": enc_params,
        "attr_decoder": attr_params,
        "struct_decoder": struct_params,
    }

    key, kx, ke = jax.random.split(key, 3)
    x = jax.random.normal(kx, (N, in_dim), jnp.float32)
    raw_edges = jax.random.randint(ke, (2, E), 0, N, dtype=jnp.int32)
    edge_index = jnp.concatenate([raw_edges, raw_edges[::-1]], axis=1)

    # Adjacency is built & normalized once, outside the per-forward path.
    n_pad = _round_up(max(N, 128), 128)
    adj_p = precompute_adjacency(edge_index, N, n_pad)
    jax.block_until_ready(adj_p)

    fwd = jax.jit(conad_forward)
    x_, s_ = fwd(params, x, adj_p)
    jax.block_until_ready((x_, s_))

    assert x_.shape == (N, in_dim)
    assert s_.shape == (N, N)
    assert bool(jnp.all(jnp.isfinite(x_.astype(jnp.float32))))
    assert bool(jnp.all(jnp.isfinite(s_.astype(jnp.float32))))
    print("KERNEL_OK")
</pallas_src>

<mosaic_0001>
module attributes {stable_mosaic.version = 11 : i64} {
  func.func @_conad_fused_kernel(%arg0: i32, %arg1: memref<128x128xbf16, #tpu.memory_space<any>>, %arg2: memref<128x128xbf16, #tpu.memory_space<vmem>>, %arg3: memref<3x128x128xbf16, #tpu.memory_space<vmem>>, %arg4: memref<128x256xbf16, #tpu.memory_space<vmem>>, %arg5: memref<3x128xf32, #tpu.memory_space<vmem>>, %arg6: memref<1x256xf32, #tpu.memory_space<vmem>>, %arg7: memref<128x128xf32, #tpu.memory_space<vmem>>, %arg8: memref<128x128xbf16, #tpu.memory_space<vmem>>, %arg9: memref<128x128xbf16, #tpu.memory_space<vmem>>, %arg10: memref<128x128xbf16, #tpu.memory_space<vmem>>, %arg11: memref<1x!tpu.dma_semaphore, #tpu.memory_space<semaphore_mem>>) attributes {dimension_semantics = [#tpu.dimension_semantics<arbitrary>], iteration_bounds = array<i64: 1>, scalar_prefetch = 0 : i64, scratch_operands = 3 : i64, tpu.core_type = #tpu.core_type<tc>, window_params = [{}, {pipeline_mode = #tpu.pipeline_mode<synchronous>, transform_indices = @transform_1, window_bounds = array<i64: 128, 128>}, {pipeline_mode = #tpu.pipeline_mode<synchronous>, transform_indices = @transform_2, window_bounds = array<i64: 3, 128, 128>}, {pipeline_mode = #tpu.pipeline_mode<synchronous>, transform_indices = @transform_3, window_bounds = array<i64: 128, 256>}, {pipeline_mode = #tpu.pipeline_mode<synchronous>, transform_indices = @transform_4, window_bounds = array<i64: 3, 128>}, {pipeline_mode = #tpu.pipeline_mode<synchronous>, transform_indices = @transform_5, window_bounds = array<i64: 1, 256>}, {pipeline_mode = #tpu.pipeline_mode<synchronous>, transform_indices = @transform_6, window_bounds = array<i64: 128, 128>}, {transform_indices = @transform_7, window_bounds = array<i64: 128, 128>}]} {
    %c0_i32 = arith.constant 0 : i32
    %0 = arith.cmpi eq, %arg0, %c0_i32 : i32
    %1 = arith.extui %0 : i1 to i32
    %c0_i32_0 = arith.constant 0 : i32
    %2 = arith.cmpi ne, %1, %c0_i32_0 : i32
    scf.if %2 {
      %c0_i32_5 = arith.constant 0 : i32
      %c0_i32_6 = arith.constant 0 : i32
      %c0_i32_7 = arith.constant 0 : i32
      %11 = tpu.memref_slice %arg1[%c0_i32_6, %c0_i32_7] : memref<128x128xbf16, #tpu.memory_space<any>> -> memref<128x128xbf16, #tpu.memory_space<any>>
      %c0_i32_8 = arith.constant 0 : i32
      %c0_i32_9 = arith.constant 0 : i32
      %12 = tpu.memref_slice %arg9[%c0_i32_8, %c0_i32_9] : memref<128x128xbf16, #tpu.memory_space<vmem>> -> memref<128x128xbf16, #tpu.memory_space<vmem>>
      %13 = tpu.memref_slice %arg11[%c0_i32_5] : memref<1x!tpu.dma_semaphore, #tpu.memory_space<semaphore_mem>> -> memref<1x!tpu.dma_semaphore, #tpu.memory_space<semaphore_mem>>
      %14 = tpu.memref_squeeze %13 : memref<1x!tpu.dma_semaphore, #tpu.memory_space<semaphore_mem>> -> memref<!tpu.dma_semaphore, #tpu.memory_space<semaphore_mem>>
      tpu.enqueue_dma source(%11 : memref<128x128xbf16, #tpu.memory_space<any>>) target(%12 : memref<128x128xbf16, #tpu.memory_space<vmem>>) target_semaphore(%14 : memref<!tpu.dma_semaphore, #tpu.memory_space<semaphore_mem>>)
      %c0_10 = arith.constant 0 : index
      %c0_11 = arith.constant 0 : index
      %15 = vector.load %arg2[%c0_10, %c0_11] : memref<128x128xbf16, #tpu.memory_space<vmem>>, vector<128x128xbf16>
      %c0_12 = arith.constant 0 : index
      %c0_13 = arith.constant 0 : index
      %c0_14 = arith.constant 0 : index
      %16 = vector.load %arg3[%c0_12, %c0_13, %c0_14] : memref<3x128x128xbf16, #tpu.memory_space<vmem>>, vector<1x128x128xbf16>
      %17 = vector.shape_cast %16 : vector<1x128x128xbf16> to vector<128x128xbf16>
      %cst_15 = arith.constant dense<0.000000e+00> : vector<128x128xf32>
      %18 = tpu.matmul %15, %17, %cst_15 {dimension_numbers = #tpu.dot_dimension_numbers<[1], [0], [0], [1], [0, 0, 1, 1], [], []>} : vector<128x128xbf16>, vector<128x128xbf16>, vector<128x128xf32> -> vector<128x128xf32>
      %19 = arith.truncf %18 : vector<128x128xf32> to vector<128x128xbf16>
      %c0_16 = arith.constant 0 : index
      %c0_17 = arith.constant 0 : index
      %20 = vector.load %arg5[%c0_16, %c0_17] : memref<3x128xf32, #tpu.memory_space<vmem>>, vector<1x128xf32>
      %c0_i32_18 = arith.constant 0 : i32
      %c0_i32_19 = arith.constant 0 : i32
      %c0_i32_20 = arith.constant 0 : i32
      %21 = tpu.memref_slice %arg1[%c0_i32_19, %c0_i32_20] : memref<128x128xbf16, #tpu.memory_space<any>> -> memref<128x128xbf16, #tpu.memory_space<any>>
      %c0_i32_21 = arith.constant 0 : i32
      %c0_i32_22 = arith.constant 0 : i32
      %22 = tpu.memref_slice %arg9[%c0_i32_21, %c0_i32_22] : memref<128x128xbf16, #tpu.memory_space<vmem>> -> memref<128x128xbf16, #tpu.memory_space<vmem>>
      %23 = tpu.memref_slice %arg11[%c0_i32_18] : memref<1x!tpu.dma_semaphore, #tpu.memory_space<semaphore_mem>> -> memref<1x!tpu.dma_semaphore, #tpu.memory_space<semaphore_mem>>
      %24 = tpu.memref_squeeze %23 : memref<1x!tpu.dma_semaphore, #tpu.memory_space<semaphore_mem>> -> memref<!tpu.dma_semaphore, #tpu.memory_space<semaphore_mem>>
      tpu.wait_dma2 semaphore(%24 : memref<!tpu.dma_semaphore, #tpu.memory_space<semaphore_mem>>) src(%21 : memref<128x128xbf16, #tpu.memory_space<any>>) dst(%22 : memref<128x128xbf16, #tpu.memory_space<vmem>>)
      %c0_23 = arith.constant 0 : index
      %c0_24 = arith.constant 0 : index
      %25 = vector.load %arg9[%c0_23, %c0_24] : memref<128x128xbf16, #tpu.memory_space<vmem>>, vector<128x128xbf16>
      %cst_25 = arith.constant dense<0.000000e+00> : vector<128x128xf32>
      %26 = tpu.matmul %25, %19, %cst_25 {dimension_numbers = #tpu.dot_dimension_numbers<[1], [0], [0], [1], [0, 0, 1, 1], [], []>} : vector<128x128xbf16>, vector<128x128xbf16>, vector<128x128xf32> -> vector<128x128xf32>
      %27 = vector.broadcast %20 : vector<1x128xf32> to vector<128x128xf32>
      %28 = arith.addf %26, %27 : vector<128x128xf32>
      %cst_26 = arith.constant 0.000000e+00 : f32
      %29 = vector.broadcast %cst_26 : f32 to vector<128x128xf32>
      %30 = arith.maximumf %28, %29 : vector<128x128xf32>
      %31 = arith.truncf %30 : vector<128x128xf32> to vector<128x128xbf16>
      %c0_27 = arith.constant 0 : index
      %c0_28 = arith.constant 0 : index
      %32 = vector.load %arg10[%c0_27, %c0_28] : memref<128x128xbf16, #tpu.memory_space<vmem>>, vector<128x128xbf16>
      tpu.vector_store %arg10[%c0_27, %c0_28], %31 {strides = array<i32>} : memref<128x128xbf16, #tpu.memory_space<vmem>>, vector<128x128xbf16>,
      %c0_29 = arith.constant 0 : index
      %c0_30 = arith.constant 0 : index
      %33 = vector.load %arg9[%c0_29, %c0_30] : memref<128x128xbf16, #tpu.memory_space<vmem>>, vector<128x128xbf16>
      %c0_31 = arith.constant 0 : index
      %c0_32 = arith.constant 0 : index
      %34 = vector.load %arg10[%c0_31, %c0_32] : memref<128x128xbf16, #tpu.memory_space<vmem>>, vector<128x128xbf16>
      %c1 = arith.constant 1 : index
      %c0_33 = arith.constant 0 : index
      %c0_34 = arith.constant 0 : index
      %35 = vector.load %arg3[%c1, %c0_33, %c0_34] : memref<3x128x128xbf16, #tpu.memory_space<vmem>>, vector<1x128x128xbf16>
      %36 = vector.shape_cast %35 : vector<1x128x128xbf16> to vector<128x128xbf16>
      %cst_35 = arith.constant dense<0.000000e+00> : vector<128x128xf32>
      %37 = tpu.matmul %34, %36, %cst_35 {dimension_numbers = #tpu.dot_dimension_numbers<[1], [0], [0], [1], [0, 0, 1, 1], [], []>} : vector<128x128xbf16>, vector<128x128xbf16>, vector<128x128xf32> -> vector<128x128xf32>
      %38 = arith.truncf %37 : vector<128x128xf32> to vector<128x128xbf16>
      %cst_36 = arith.constant dense<0.000000e+00> : vector<128x128xf32>
      %39 = tpu.matmul %33, %38, %cst_36 {dimension_numbers = #tpu.dot_dimension_numbers<[1], [0], [0], [1], [0, 0, 1, 1], [], []>} : vector<128x128xbf16>, vector<128x128xbf16>, vector<128x128xf32> -> vector<128x128xf32>
      %c1_37 = arith.constant 1 : index
      %c0_38 = arith.constant 0 : index
      %40 = vector.load %arg5[%c1_37, %c0_38] : memref<3x128xf32, #tpu.memory_space<vmem>>, vector<1x128xf32>
      %41 = vector.broadcast %40 : vector<1x128xf32> to vector<128x128xf32>
      %42 = arith.addf %39, %41 : vector<128x128xf32>
      %43 = arith.truncf %42 : vector<128x128xf32> to vector<128x128xbf16>
      %c0_39 = arith.constant 0 : index
      %c0_40 = arith.constant 0 : index
      %44 = vector.load %arg4[%c0_39, %c0_40] : memref<128x256xbf16, #tpu.memory_space<vmem>>, vector<128x256xbf16>
      %cst_41 = arith.constant dense<0.000000e+00> : vector<128x256xf32>
      %45 = tpu.matmul %43, %44, %cst_41 {dimension_numbers = #tpu.dot_dimension_numbers<[1], [0], [0], [1], [0, 0, 1, 1], [], []>} : vector<128x128xbf16>, vector<128x256xbf16>, vector<128x256xf32> -> vector<128x256xf32>
      %46 = arith.truncf %45 : vector<128x256xf32> to vector<128x256xbf16>
      %cst_42 = arith.constant dense<0.000000e+00> : vector<128x256xf32>
      %47 = tpu.matmul %33, %46, %cst_42 {dimension_numbers = #tpu.dot_dimension_numbers<[1], [0], [0], [1], [0, 0, 1, 1], [], []>} : vector<128x128xbf16>, vector<128x256xbf16>, vector<128x256xf32> -> vector<128x256xf32>
      %c0_43 = arith.constant 0 : index
      %c0_44 = arith.constant 0 : index
      %48 = vector.load %arg6[%c0_43, %c0_44] : memref<1x256xf32, #tpu.memory_space<vmem>>, vector<1x256xf32>
      %49 = vector.broadcast %48 : vector<1x256xf32> to vector<128x256xf32>
      %50 = arith.addf %47, %49 : vector<128x256xf32>
      %51 = vector.extract_strided_slice %50 {offsets = [0, 0], sizes = [128, 128], strides = [1, 1]} : vector<128x256xf32> to vector<128x128xf32>
      %52 = vector.extract_strided_slice %50 {offsets = [0, 128], sizes = [128, 128], strides = [1, 1]} : vector<128x256xf32> to vector<128x128xf32>
      %cst_45 = arith.constant 0.000000e+00 : f32
      %53 = vector.broadcast %cst_45 : f32 to vector<128x128xf32>
      %54 = arith.maximumf %51, %53 : vector<128x128xf32>
      %55 = arith.truncf %54 : vector<128x128xf32> to vector<128x128xbf16>
      %56 = arith.truncf %52 : vector<128x128xf32> to vector<128x128xbf16>
      %c2 = arith.constant 2 : index
      %c0_46 = arith.constant 0 : index
      %c0_47 = arith.constant 0 : index
      %57 = vector.load %arg3[%c2, %c0_46, %c0_47] : memref<3x128x128xbf16, #tpu.memory_space<vmem>>, vector<1x128x128xbf16>
      %58 = vector.shape_cast %57 : vector<1x128x128xbf16> to vector<128x128xbf16>
      %cst_48 = arith.constant dense<0.000000e+00> : vector<128x128xf32>
      %59 = tpu.matmul %55, %58, %cst_48 {dimension_numbers = #tpu.dot_dimension_numbers<[1], [0], [0], [1], [0, 0, 1, 1], [], []>} : vector<128x128xbf16>, vector<128x128xbf16>, vector<128x128xf32> -> vector<128x128xf32>
      %60 = arith.truncf %59 : vector<128x128xf32> to vector<128x128xbf16>
      %cst_49 = arith.constant dense<0.000000e+00> : vector<128x128xf32>
      %61 = tpu.matmul %33, %60, %cst_49 {dimension_numbers = #tpu.dot_dimension_numbers<[1], [0], [0], [1], [0, 0, 1, 1], [], []>} : vector<128x128xbf16>, vector<128x128xbf16>, vector<128x128xf32> -> vector<128x128xf32>
      %c2_50 = arith.constant 2 : index
      %c0_51 = arith.constant 0 : index
      %62 = vector.load %arg5[%c2_50, %c0_51] : memref<3x128xf32, #tpu.memory_space<vmem>>, vector<1x128xf32>
      %63 = vector.broadcast %62 : vector<1x128xf32> to vector<128x128xf32>
      %64 = arith.addf %61, %63 : vector<128x128xf32>
      %c0_52 = arith.constant 0 : index
      %c0_53 = arith.constant 0 : index
      %65 = vector.load %arg7[%c0_52, %c0_53] : memref<128x128xf32, #tpu.memory_space<vmem>>, vector<128x128xf32>
      tpu.vector_store %arg7[%c0_52, %c0_53], %64 {strides = array<i32>} : memref<128x128xf32, #tpu.memory_space<vmem>>, vector<128x128xf32>,
      %c0_54 = arith.constant 0 : index
      %c0_55 = arith.constant 0 : index
      %66 = vector.load %arg10[%c0_54, %c0_55] : memref<128x128xbf16, #tpu.memory_space<vmem>>, vector<128x128xbf16>
      tpu.vector_store %arg10[%c0_54, %c0_55], %56 {strides = array<i32>} : memref<128x128xbf16, #tpu.memory_space<vmem>>, vector<128x128xbf16>,
    } else {
    }
    %c128_i32 = arith.constant 128 : i32
    %3 = arith.muli %arg0, %c128_i32 : i32
    %4 = tpu.assume_multiple %3, 128 : i32
    %5 = arith.index_cast %4 : i32 to index
    %c0 = arith.constant 0 : index
    %6 = vector.load %arg10[%5, %c0] : memref<128x128xbf16, #tpu.memory_space<vmem>>, vector<128x128xbf16>
    %c0_1 = arith.constant 0 : index
    %c0_2 = arith.constant 0 : index
    %7 = vector.load %arg10[%c0_1, %c0_2] : memref<128x128xbf16, #tpu.memory_space<vmem>>, vector<128x128xbf16>
    %cst = arith.constant dense<0.000000e+00> : vector<128x128xf32>
    %8 = tpu.matmul %6, %7, %cst {dimension_numbers = #tpu.dot_dimension_numbers<[1], [1], [0], [0], [0, 0, 1, 0], [], []>} : vector<128x128xbf16>, vector<128x128xbf16>, vector<128x128xf32> -> vector<128x128xf32>
    %9 = arith.truncf %8 : vector<128x128xf32> to vector<128x128xbf16>
    %c0_3 = arith.constant 0 : index
    %c0_4 = arith.constant 0 : index
    %10 = vector.load %arg8[%c0_3, %c0_4] : memref<128x128xbf16, #tpu.memory_space<vmem>>, vector<128x128xbf16>
    tpu.vector_store %arg8[%c0_3, %c0_4], %9 {strides = array<i32>} : memref<128x128xbf16, #tpu.memory_space<vmem>>, vector<128x128xbf16>,
    return
  }
  func.func @transform_1(%arg0: i32) -> (i32, i32) {
    %c0_i32 = arith.constant 0 : i32
    %c0_i32_0 = arith.constant 0 : i32
    %c0_i32_1 = arith.constant 0 : i32
    return %c0_i32, %c0_i32_0 : i32, i32
  }
  func.func @transform_2(%arg0: i32) -> (i32, i32, i32) {
    %c0_i32 = arith.constant 0 : i32
    %c0_i32_0 = arith.constant 0 : i32
    %c0_i32_1 = arith.constant 0 : i32
    %c0_i32_2 = arith.constant 0 : i32
    return %c0_i32, %c0_i32_0, %c0_i32_1 : i32, i32, i32
  }
  func.func @transform_3(%arg0: i32) -> (i32, i32) {
    %c0_i32 = arith.constant 0 : i32
    %c0_i32_0 = arith.constant 0 : i32
    %c0_i32_1 = arith.constant 0 : i32
    return %c0_i32, %c0_i32_0 : i32, i32
  }
  func.func @transform_4(%arg0: i32) -> (i32, i32) {
    %c0_i32 = arith.constant 0 : i32
    %c0_i32_0 = arith.constant 0 : i32
    %c0_i32_1 = arith.constant 0 : i32
    return %c0_i32, %c0_i32_0 : i32, i32
  }
  func.func @transform_5(%arg0: i32) -> (i32, i32) {
    %c0_i32 = arith.constant 0 : i32
    %c0_i32_0 = arith.constant 0 : i32
    %c0_i32_1 = arith.constant 0 : i32
    return %c0_i32, %c0_i32_0 : i32, i32
  }
  func.func @transform_6(%arg0: i32) -> (i32, i32) {
    %c0_i32 = arith.constant 0 : i32
    %c0_i32_0 = arith.constant 0 : i32
    %c0_i32_1 = arith.constant 0 : i32
    return %c0_i32, %c0_i32_0 : i32, i32
  }
  func.func @transform_7(%arg0: i32) -> (i32, i32) {
    %c0_i32 = arith.constant 0 : i32
    %c0_i32_0 = arith.constant 0 : i32
    return %arg0, %c0_i32 : i32, i32
  }
}

</mosaic_0001>

<llo_original>
// kernel: conad_forward.1
$region0: #{conad_forward.1}
  #allocation0 [shape = 'u32[]', space=smem, size = 0x4, offset = 0x4, fixed_abs, tag = 'smem constant byte address 0x4 - core index']
  #allocation1 [shape = 'u32[144,128]{1,0:T(1,128)}', space=vmem, size = 0x12000, scoped, tag = 'internal scratch']
  #allocation2 [shape = 'bf16[128,128]{1,0:T(16,128)(2,1)}', space=vmem, size = 0x8000, scoped, tag = 'scratch operand']
  #allocation3 [shape = 'bf16[128,128]{1,0:T(16,128)(2,1)}', space=vmem, size = 0x8000, scoped, tag = 'scratch operand']
  #allocation4 [shape = 's32[1]{0}', space=sflag, size = 0x4, scoped, tag = 'scratch operand']
  #allocation5 [shape = 's32[]', space=sflag, size = 0x4, offset = 0, fixed_abs, tag = 'sflag constant byte address 0x0 - dummy sync flag']
  %s0 = inlined_call_operand.vmem [shape: bf16[128,128], index: 0, kind: input, shape index: {}]
  %s1 = inlined_call_operand.vmem [shape: bf16[128,128], index: 1, kind: input, shape index: {}]
  %s2 = inlined_call_operand.vmem [shape: bf16[3,128,128], index: 2, kind: input, shape index: {}]
  %s3 = inlined_call_operand.vmem [shape: bf16[128,256], index: 3, kind: input, shape index: {}]
  %s4 = inlined_call_operand.vmem [shape: f32[3,128], index: 4, kind: input, shape index: {}]
  %s5 = inlined_call_operand.vmem [shape: f32[1,256], index: 5, kind: input, shape index: {}]
  %s6 = inlined_call_operand.vmem [shape: f32[128,128], index: 6, kind: output, shape index: {0}]
  %s7 = inlined_call_operand.vmem [shape: bf16[128,128], index: 7, kind: output, shape index: {1}]
  %8 = xla_tuple %s6, %s7
  %s9 = sld [smem:[#allocation0]]
  $region76: #{conad_forward.1} parent=0
    _
  %s11 = ssub.s32 1, %s9
  %s12 = scalar_select 0, %s11, %s9
  // Predicated region
  $region2: #{conad_forward.1} parent=0 // pred_check
    _
  $region3: #{conad_forward.1} parent=0 // pred_check_branch
    %14 = sbr.rel (0) target = $region5
  $region4: #{conad_forward.1} parent=0 // pred_region
    _
  $region5: #{conad_forward.1} parent=0 // pred_fallthru
    _
  // Predicated region
  $region6: #{conad_forward.1} parent=0 // pred_check
    _
  $region7: #{conad_forward.1} parent=0 // pred_check_branch
    %16 = sbr.rel (0) target = $region9
  $region8: #{conad_forward.1} parent=0 // pred_region
    _
  $region9: #{conad_forward.1} parent=0 // pred_fallthru
    _
  // Predicated region
  $region10: #{conad_forward.1} parent=0 // pred_check
    _
  $region11: #{conad_forward.1} parent=0 // pred_check_branch
    %18 = sbr.rel (0) target = $region13
  $region12: #{conad_forward.1} parent=0 // pred_region
    _
  $region13: #{conad_forward.1} parent=0 // pred_fallthru
    _
  // Predicated region
  $region14: #{conad_forward.1} parent=0 // pred_check
    _
  $region15: #{conad_forward.1} parent=0 // pred_check_branch
    %20 = sbr.rel (0) target = $region17
  $region16: #{conad_forward.1} parent=0 // pred_region
    _
  $region17: #{conad_forward.1} parent=0 // pred_fallthru
    _
  // Predicated region
  $region18: #{conad_forward.1} parent=0 // pred_check
    _
  $region19: #{conad_forward.1} parent=0 // pred_check_branch
    %22 = sbr.rel (0) target = $region21
  $region20: #{conad_forward.1} parent=0 // pred_region
    _
  $region21: #{conad_forward.1} parent=0 // pred_fallthru
    _
  %p24 = scmp.eq.s32.totalorder 0, 0
  // Predicated region
  $region22: #{conad_forward.1} parent=0 // pred_check
    %p25 = pneg %p24
  $region23: #{conad_forward.1} parent=0 // pred_check_branch
    %27 = sbr.rel (%p25) target = $region25
  $region24: #{conad_forward.1} parent=0 // pred_region
    %p29 = scmp.lt.u32.totalorder 64, 8
    %p30 = pneg %p29
    // Predicated region
    $region26: #{conad_forward.1} parent=24 // pred_check
      _
    $region27: #{conad_forward.1} parent=24 // pred_check_branch
      %32 = sbr.rel (%p29) target = $region29
    $region28: #{conad_forward.1} parent=24 // pred_region
      %s47 = sand.u32 64, 7
      %p48 = scmp.eq.s32.totalorder %s47, 0
      // Predicated region
      $region41: #{conad_forward.1} parent=28 // pred_check
        %p49 = pneg %p48
      $region42: #{conad_forward.1} parent=28 // pred_check_branch
        %51 = sbr.rel (%p49) target = $region44
      $region43: #{conad_forward.1} parent=28 // pred_region
        loop: start=0, step=1, limit=1
        $region45: #{conad_forward.1} parent=43 // loop_pre_header
          _
        $region46: #{conad_forward.1} parent=43 // loop_header
          %s53 = sphi 0, %s57
          %p54 = scmp.ge.s32.totalorder %s53, 1
          %s58 = sphi %s0, %s0
          %s59 = sphi [#allocation2], [#allocation2]
        $region47: #{conad_forward.1} parent=43 // loop_header_branch
          %56 = sbr.rel (%p54) target = $region51
        $region48: #{conad_forward.1} parent=43 // loop_body
          %v60 = vld [vmem:[%s58] sm:$0xff]
          %61 = vst [vmem:[%s59] sm:$0xff] %v60
          %v62 = vld [vmem:[%s58 + $0x8] sm:$0xff]
          %63 = vst [vmem:[%s59 + $0x8] sm:$0xff] %v62
          %v64 = vld [vmem:[%s58 + $0x10] sm:$0xff]
          %65 = vst [vmem:[%s59 + $0x10] sm:$0xff] %v64
          %v66 = vld [vmem:[%s58 + $0x18] sm:$0xff]
          %67 = vst [vmem:[%s59 + $0x18] sm:$0xff] %v66
          %v68 = vld [vmem:[%s58 + $0x20] sm:$0xff]
          %69 = vst [vmem:[%s59 + $0x20] sm:$0xff] %v68
          %v70 = vld [vmem:[%s58 + $0x28] sm:$0xff]
          %71 = vst [vmem:[%s59 + $0x28] sm:$0xff] %v70
          %v72 = vld [vmem:[%s58 + $0x30] sm:$0xff]
          %73 = vst [vmem:[%s59 + $0x30] sm:$0xff] %v72
          %v74 = vld [vmem:[%s58 + $0x38] sm:$0xff]
          %75 = vst [vmem:[%s59 + $0x38] sm:$0xff] %v74
        $region49: #{conad_forward.1} parent=43 // loop_footer
          %s57 = sadd.s32 1, %s53
        $region50: #{conad_forward.1} parent=43 // loop_footer_branch
          %52 = sbr.rel target = $region46
        $region51: #{conad_forward.1} parent=43 // loop_exit
          _
      $region44: #{conad_forward.1} parent=28 // pred_fallthru
        _
      %p76 = pneg %p48
      // Predicated region
      $region52: #{conad_forward.1} parent=28 // pred_check
        _
      $region53: #{conad_forward.1} parent=28 // pred_check_branch
        %78 = sbr.rel (%p48) target = $region55
      $region54: #{conad_forward.1} parent=28 // pred_region
        %s79 = sand.u32 64, 7
      $region55: #{conad_forward.1} parent=28 // pred_fallthru
        _
    $region29: #{conad_forward.1} parent=24 // pred_fallthru
      _
    // Predicated region
    $region30: #{conad_forward.1} parent=24 // pred_check
      %p33 = pneg %p29
    $region31: #{conad_forward.1} parent=24 // pred_check_branch
      %35 = sbr.rel (%p33) target = $region33
    $region32: #{conad_forward.1} parent=24 // pred_region
      %s36 = sshllo.u32 0, 64
      loop: start=0, step=1, limit=1
      $region34: #{conad_forward.1} parent=32 // loop_pre_header
        _
      $region35: #{conad_forward.1} parent=32 // loop_header
        %s38 = sphi 0, %s42
        %p39 = scmp.ge.s32.totalorder %s38, 1
        %s43 = sphi %s0, %s0
        %s44 = sphi [#allocation2], [#allocation2]
      $region36: #{conad_forward.1} parent=32 // loop_header_branch
        %41 = sbr.rel (%p39) target = $region40
      $region37: #{conad_forward.1} parent=32 // loop_body
        %v45 = vld [vmem:[%s43] sm:%s36]
        %46 = vst [vmem:[%s44] sm:%s36] %v45
      $region38: #{conad_forward.1} parent=32 // loop_footer
        %s42 = sadd.s32 1, %s38
      $region39: #{conad_forward.1} parent=32 // loop_footer_branch
        %37 = sbr.rel target = $region35
      $region40: #{conad_forward.1} parent=32 // loop_exit
        _
    $region33: #{conad_forward.1} parent=24 // pred_fallthru
      _
    // Predicated region
    $region56: #{conad_forward.1} parent=24 // pred_check
      _
    $region57: #{conad_forward.1} parent=24 // pred_check_branch
      %82 = sbr.rel (0) target = $region59
    $region58: #{conad_forward.1} parent=24 // pred_region
      %83 = vsyncadd [#allocation4], 1024
    $region59: #{conad_forward.1} parent=24 // pred_fallthru
      _
    %v84 = vld [vmem:[%s1] sm:$0xf]
    %v85 = vld [vmem:[%s1 + $0x4] sm:$0xf]
    %v86 = vld [vmem:[%s1 + $0x8] sm:$0xf]
    %v87 = vld [vmem:[%s1 + $0xc] sm:$0xf]
    %v88 = vld [vmem:[%s1 + $0x10] sm:$0xf]
    %v89 = vld [vmem:[%s1 + $0x14] sm:$0xf]
    %v90 = vld [vmem:[%s1 + $0x18] sm:$0xf]
    %v91 = vld [vmem:[%s1 + $0x1c] sm:$0xf]
    %v92 = vld [vmem:[%s1 + $0x20] sm:$0xf]
    %v93 = vld [vmem:[%s1 + $0x24] sm:$0xf]
    %v94 = vld [vmem:[%s1 + $0x28] sm:$0xf]
    %v95 = vld [vmem:[%s1 + $0x2c] sm:$0xf]
    %v96 = vld [vmem:[%s1 + $0x30] sm:$0xf]
    %v97 = vld [vmem:[%s1 + $0x34] sm:$0xf]
    %v98 = vld [vmem:[%s1 + $0x38] sm:$0xf]
    %v99 = vld [vmem:[%s1 + $0x3c] sm:$0xf]
    %v100 = vld [vmem:[%s2] sm:$0xf]
    %v101 = vld [vmem:[%s2 + $0x4] sm:$0xf]
    %v102 = vld [vmem:[%s2 + $0x8] sm:$0xf]
    %v103 = vld [vmem:[%s2 + $0xc] sm:$0xf]
    %v104 = vld [vmem:[%s2 + $0x10] sm:$0xf]
    %v105 = vld [vmem:[%s2 + $0x14] sm:$0xf]
    %v106 = vld [vmem:[%s2 + $0x18] sm:$0xf]
    %v107 = vld [vmem:[%s2 + $0x1c] sm:$0xf]
    %v108 = vld [vmem:[%s2 + $0x20] sm:$0xf]
    %v109 = vld [vmem:[%s2 + $0x24] sm:$0xf]
    %v110 = vld [vmem:[%s2 + $0x28] sm:$0xf]
    %v111 = vld [vmem:[%s2 + $0x2c] sm:$0xf]
    %v112 = vld [vmem:[%s2 + $0x30] sm:$0xf]
    %v113 = vld [vmem:[%s2 + $0x34] sm:$0xf]
    %v114 = vld [vmem:[%s2 + $0x38] sm:$0xf]
    %v115 = vld [vmem:[%s2 + $0x3c] sm:$0xf]
    %v132 = vunpack.c.l.b16 %v84
    %v133 = vunpack.c.l.b16 %v85
    %v134 = vunpack.c.l.b16 %v86
    %v135 = vunpack.c.l.b16 %v87
    %v136 = vunpack.c.l.b16 %v88
    %v137 = vunpack.c.l.b16 %v89
    %v138 = vunpack.c.l.b16 %v90
    %v139 = vunpack.c.l.b16 %v91
    %v140 = vunpack.c.l.b16 %v92
    %v141 = vunpack.c.l.b16 %v93
    %v142 = vunpack.c.l.b16 %v94
    %v143 = vunpack.c.l.b16 %v95
    %v144 = vunpack.c.l.b16 %v96
    %v145 = vunpack.c.l.b16 %v97
    %v146 = vunpack.c.l.b16 %v98
    %v147 = vunpack.c.l.b16 %v99
    %v148 = vpack.c.b16 %v133, %v132
    %v149 = vpack.c.b16 %v135, %v134
    %v150 = vpack.c.b16 %v137, %v136
    %v151 = vpack.c.b16 %v139, %v138
    %v152 = vpack.c.b16 %v141, %v140
    %v153 = vpack.c.b16 %v143, %v142
    %v154 = vpack.c.b16 %v145, %v144
    %v155 = vpack.c.b16 %v147, %v146
    %v180 = vunpack.c.l.b16 %v100
    %v181 = vunpack.c.l.b16 %v101
    %v182 = vunpack.c.l.b16 %v102
    %v183 = vunpack.c.l.b16 %v103
    %v184 = vunpack.c.l.b16 %v104
    %v185 = vunpack.c.l.b16 %v105
    %v186 = vunpack.c.l.b16 %v106
    %v187 = vunpack.c.l.b16 %v107
    %v188 = vunpack.c.l.b16 %v108
    %v189 = vunpack.c.l.b16 %v109
    %v190 = vunpack.c.l.b16 %v110
    %v191 = vunpack.c.l.b16 %v111
    %v192 = vunpack.c.l.b16 %v112
    %v193 = vunpack.c.l.b16 %v113
    %v194 = vunpack.c.l.b16 %v114
    %v195 = vunpack.c.l.b16 %v115
    %v196 = vpack.c.b16 %v181, %v180
    %v197 = vpack.c.b16 %v183, %v182
    %v198 = vpack.c.b16 %v185, %v184
    %v199 = vpack.c.b16 %v187, %v186
    %v200 = vpack.c.b16 %v189, %v188
    %v201 = vpack.c.b16 %v191, %v190
    %v202 = vpack.c.b16 %v193, %v192
    %v203 = vpack.c.b16 %v195, %v194
    %212 = vmatprep.subr.bf16.mxu0 0
    %213 = vmatpush1.bf16.msra.mxu0 %v196
    %214 = vmatprep.subr.bf16.mxu0 0
    %215 = vmatpush1.bf16.msra.mxu0 %v197
    %216 = vmatprep.subr.bf16.mxu0 0
    %217 = vmatpush1.bf16.msra.mxu0 %v198
    %218 = vmatprep.subr.bf16.mxu0 0
    %219 = vmatpush1.bf16.msra.mxu0 %v199
    %220 = vmatprep.subr.bf16.mxu0 0
    %221 = vmatpush1.bf16.msra.mxu0 %v200
    %222 = vmatprep.subr.bf16.mxu0 0
    %223 = vmatpush1.bf16.msra.mxu0 %v201
    %224 = vmatprep.subr.bf16.mxu0 0
    %225 = vmatpush1.bf16.msra.mxu0 %v202
    %226 = vmatprep.subr.bf16.mxu0 0
    %227 = vmatpush1.bf16.msra.mxu0 %v203
    %228 = vmatprep.subr.bf16.mxu0 0
    %229 = vmatpush1.bf16.msra.mxu0 0
    %230 = vmatprep.subr.bf16.mxu0 0
    %231 = vmatpush1.bf16.msra.mxu0 0
    %232 = vmatprep.subr.bf16.mxu0 0
    %233 = vmatpush1.bf16.msra.mxu0 0
    %234 = vmatprep.subr.bf16.mxu0 0
    %235 = vmatpush1.bf16.msra.mxu0 0
    %236 = vmatprep.subr.bf16.mxu0 0
    %237 = vmatpush1.bf16.msra.mxu0 0
    %238 = vmatprep.subr.bf16.mxu0 0
    %239 = vmatpush1.bf16.msra.mxu0 0
    %240 = vmatprep.subr.bf16.mxu0 0
    %241 = vmatpush1.bf16.msra.mxu0 0
    %242 = vmatprep.subr.bf16.mxu0 0
    %243 = vmatpush1.bf16.msra.mxu0 0
    %244 = vmatprep.mubr.bf16.mxu0 0
    %245 = vmatmul.mubr.bf16.gmra.mrb[0].mxu0 %v148
    %v246 = vpop.f32.mrb[0].mxu0
    %v247 = vadd.f32 0.0, %v246
    %v248 = vpop.f32.mrb[0].mxu0
    %v249 = vpop.f32.mrb[0].mxu0
    %v250 = vadd.f32 0.0, %v249
    %v251 = vpop.f32.mrb[0].mxu0
    %252 = vmatprep.mubr.bf16.mxu0 0
    %253 = vmatmul.mubr.bf16.gmra.mrb[0].mxu0 %v149
    %v254 = vpop.f32.mrb[0].mxu0
    %v255 = vadd.f32 0.0, %v254
    %v256 = vpop.f32.mrb[0].mxu0
    %v257 = vpop.f32.mrb[0].mxu0
    %v258 = vadd.f32 0.0, %v257
    %v259 = vpop.f32.mrb[0].mxu0
    %260 = vmatprep.mubr.bf16.mxu0 0
    %261 = vmatmul.mubr.bf16.gmra.mrb[0].mxu0 %v150
    %v262 = vpop.f32.mrb[0].mxu0
    %v263 = vadd.f32 0.0, %v262
    %v264 = vpop.f32.mrb[0].mxu0
    %v265 = vpop.f32.mrb[0].mxu0
    %v266 = vadd.f32 0.0, %v265
    %v267 = vpop.f32.mrb[0].mxu0
    %268 = vmatprep.mubr.bf16.mxu0 0
    %269 = vmatmul.mubr.bf16.gmra.mrb[0].mxu0 %v151
    %v270 = vpop.f32.mrb[0].mxu0
    %v271 = vadd.f32 0.0, %v270
    %v272 = vpop.f32.mrb[0].mxu0
    %v273 = vpop.f32.mrb[0].mxu0
    %v274 = vadd.f32 0.0, %v273
    %v275 = vpop.f32.mrb[0].mxu0
    %276 = vmatprep.mubr.bf16.mxu0 0
    %277 = vmatmul.mubr.bf16.gmra.mrb[0].mxu0 %v152
    %v278 = vpop.f32.mrb[0].mxu0
    %v279 = vadd.f32 0.0, %v278
    %v280 = vpop.f32.mrb[0].mxu0
    %v281 = vpop.f32.mrb[0].mxu0
    %v282 = vadd.f32 0.0, %v281
    %v283 = vpop.f32.mrb[0].mxu0
    %284 = vmatprep.mubr.bf16.mxu0 0
    %285 = vmatmul.mubr.bf16.gmra.mrb[0].mxu0 %v153
    %v286 = vpop.f32.mrb[0].mxu0
    %v287 = vadd.f32 0.0, %v286
    %v288 = vpop.f32.mrb[0].mxu0
    %v289 = vpop.f32.mrb[0].mxu0
    %v290 = vadd.f32 0.0, %v289
    %v291 = vpop.f32.mrb[0].mxu0
    %292 = vmatprep.mubr.bf16.mxu0 0
    %293 = vmatmul.mubr.bf16.gmra.mrb[0].mxu0 %v154
    %v294 = vpop.f32.mrb[0].mxu0
    %v295 = vadd.f32 0.0, %v294
    %v296 = vpop.f32.mrb[0].mxu0
    %v297 = vpop.f32.mrb[0].mxu0
    %v298 = vadd.f32 0.0, %v297
    %v299 = vpop.f32.mrb[0].mxu0
    %300 = vmatprep.mubr.bf16.mxu0 0
    %301 = vmatmul.mubr.bf16.gmra.mrb[0].mxu0 %v155
    %v302 = vpop.f32.mrb[0].mxu0
    %v303 = vadd.f32 0.0, %v302
    %v304 = vpop.f32.mrb[0].mxu0
    %v305 = vpop.f32.mrb[0].mxu0
    %v306 = vadd.f32 0.0, %v305
    %v307 = vpop.f32.mrb[0].mxu0
    %308 = vdwg.mxu0
    %v309 = vpack.c.bf16 %v250, %v247
    %v310 = vpack.c.bf16 %v258, %v255
    %v311 = vpack.c.bf16 %v266, %v263
    %v312 = vpack.c.bf16 %v274, %v271
    %v313 = vpack.c.bf16 %v282, %v279
    %v314 = vpack.c.bf16 %v290, %v287
    %v315 = vpack.c.bf16 %v298, %v295
    %v316 = vpack.c.bf16 %v306, %v303
    %v317 = vld [vmem:[%s4] sm:$0x1]
    %s318 = smul.u32 4, 16
    %s319 = smul.u32 %s318, 1
    %s320 = sshll.u32 %s319, 4
    %321 = dma.done [#allocation4], %s320
    %v322 = vld [vmem:[#allocation2] sm:$0xff]
    %v323 = vld [vmem:[#allocation2 + $0x8] sm:$0xff]
    %v324 = vld [vmem:[#allocation2 + $0x10] sm:$0xff]
    %v325 = vld [vmem:[#allocation2 + $0x18] sm:$0xff]
    %v326 = vld [vmem:[#allocation2 + $0x20] sm:$0xff]
    %v327 = vld [vmem:[#allocation2 + $0x28] sm:$0xff]
    %v328 = vld [vmem:[#allocation2 + $0x30] sm:$0xff]
    %v329 = vld [vmem:[#allocation2 + $0x38] sm:$0xff]
    %v330 = vlaneseq
    %v331 = vshrl.u32 %v330, 7
    %v332 = vsub.s32 0, %v331
    %v333 = vrot.slane %v317, %v332
    %334 = vmatprep.subr.bf16.mxu0 0
    %335 = vmatpush1.bf16.msra.mxu0 %v309
    %336 = vmatprep.subr.bf16.mxu0 0
    %337 = vmatpush1.bf16.msra.mxu0 %v310
    %338 = vmatprep.subr.bf16.mxu0 0
    %339 = vmatpush1.bf16.msra.mxu0 %v311
    %340 = vmatprep.subr.bf16.mxu0 0
    %341 = vmatpush1.bf16.msra.mxu0 %v312
    %342 = vmatprep.subr.bf16.mxu0 0
    %343 = vmatpush1.bf16.msra.mxu0 %v313
    %344 = vmatprep.subr.bf16.mxu0 0
    %345 = vmatpush1.bf16.msra.mxu0 %v314
    %346 = vmatprep.subr.bf16.mxu0 0
    %347 = vmatpush1.bf16.msra.mxu0 %v315
    %348 = vmatprep.subr.bf16.mxu0 0
    %349 = vmatpush1.bf16.msra.mxu0 %v316
    %350 = vmatprep.subr.bf16.mxu0 0
    %351 = vmatpush1.bf16.msra.mxu0 0
    %352 = vmatprep.subr.bf16.mxu0 0
    %353 = vmatpush1.bf16.msra.mxu0 0
    %354 = vmatprep.subr.bf16.mxu0 0
    %355 = vmatpush1.bf16.msra.mxu0 0
    %356 = vmatprep.subr.bf16.mxu0 0
    %357 = vmatpush1.bf16.msra.mxu0 0
    %358 = vmatprep.subr.bf16.mxu0 0
    %359 = vmatpush1.bf16.msra.mxu0 0
    %360 = vmatprep.subr.bf16.mxu0 0
    %361 = vmatpush1.bf16.msra.mxu0 0
    %362 = vmatprep.subr.bf16.mxu0 0
    %363 = vmatpush1.bf16.msra.mxu0 0
    %364 = vmatprep.subr.bf16.mxu0 0
    %365 = vmatpush1.bf16.msra.mxu0 0
    %366 = vmatprep.mubr.bf16.mxu0 0
    %367 = vmatmul.mubr.bf16.gmra.mrb[0].mxu0 %v322
    %v368 = vpop.f32.mrb[0].mxu0
    %v369 = vadd.f32 %v333, %v368
    %v370 = vpop.f32.mrb[0].mxu0
    %v371 = vpop.f32.mrb[0].mxu0
    %v372 = vadd.f32 %v333, %v371
    %v373 = vpop.f32.mrb[0].mxu0
    %374 = vmatprep.mubr.bf16.mxu0 0
    %375 = vmatmul.mubr.bf16.gmra.mrb[0].mxu0 %v323
    %v376 = vpop.f32.mrb[0].mxu0
    %v377 = vadd.f32 %v333, %v376
    %v378 = vpop.f32.mrb[0].mxu0
    %v379 = vpop.f32.mrb[0].mxu0
    %v380 = vadd.f32 %v333, %v379
    %v381 = vpop.f32.mrb[0].mxu0
    %382 = vmatprep.mubr.bf16.mxu0 0
    %383 = vmatmul.mubr.bf16.gmra.mrb[0].mxu0 %v324
    %v384 = vpop.f32.mrb[0].mxu0
    %v385 = vadd.f32 %v333, %v384
    %v386 = vpop.f32.mrb[0].mxu0
    %v387 = vpop.f32.mrb[0].mxu0
    %v388 = vadd.f32 %v333, %v387
    %v389 = vpop.f32.mrb[0].mxu0
    %390 = vmatprep.mubr.bf16.mxu0 0
    %391 = vmatmul.mubr.bf16.gmra.mrb[0].mxu0 %v325
    %v392 = vpop.f32.mrb[0].mxu0
    %v393 = vadd.f32 %v333, %v392
    %v394 = vpop.f32.mrb[0].mxu0
    %v395 = vpop.f32.mrb[0].mxu0
    %v396 = vadd.f32 %v333, %v395
    %v397 = vpop.f32.mrb[0].mxu0
    %398 = vmatprep.mubr.bf16.mxu0 0
    %399 = vmatmul.mubr.bf16.gmra.mrb[0].mxu0 %v326
    %v400 = vpop.f32.mrb[0].mxu0
    %v401 = vadd.f32 %v333, %v400
    %v402 = vpop.f32.mrb[0].mxu0
    %v403 = vpop.f32.mrb[0].mxu0
    %v404 = vadd.f32 %v333, %v403
    %v405 = vpop.f32.mrb[0].mxu0
    %406 = vmatprep.mubr.bf16.mxu0 0
    %407 = vmatmul.mubr.bf16.gmra.mrb[0].mxu0 %v327
    %v408 = vpop.f32.mrb[0].mxu0
    %v409 = vadd.f32 %v333, %v408
    %v410 = vpop.f32.mrb[0].mxu0
    %v411 = vpop.f32.mrb[0].mxu0
    %v412 = vadd.f32 %v333, %v411
    %v413 = vpop.f32.mrb[0].mxu0
    %414 = vmatprep.mubr.bf16.mxu0 0
    %415 = vmatmul.mubr.bf16.gmra.mrb[0].mxu0 %v328
    %v416 = vpop.f32.mrb[0].mxu0
    %v417 = vadd.f32 %v333, %v416
    %v418 = vpop.f32.mrb[0].mxu0
    %v419 = vpop.f32.mrb[0].mxu0
    %v420 = vadd.f32 %v333, %v419
    %v421 = vpop.f32.mrb[0].mxu0
    %422 = vmatprep.mubr.bf16.mxu0 0
    %423 = vmatmul.mubr.bf16.gmra.mrb[0].mxu0 %v329
    %v424 = vpop.f32.mrb[0].mxu0
    %v425 = vadd.f32 %v333, %v424
    %v426 = vpop.f32.mrb[0].mxu0
    %v427 = vpop.f32.mrb[0].mxu0
    %v428 = vadd.f32 %v333, %v427
    %v429 = vpop.f32.mrb[0].mxu0
    %430 = vdwg.mxu0
    %v431 = vmax.f32 %v369, 0.0
    %v432 = vmax.f32 %v372, 0.0
    %v433 = vmax.f32 %v377, 0.0
    %v434 = vmax.f32 %v380, 0.0
    %v435 = vmax.f32 %v385, 0.0
    %v436 = vmax.f32 %v388, 0.0
    %v437 = vmax.f32 %v393, 0.0
    %v438 = vmax.f32 %v396, 0.0
    %v439 = vmax.f32 %v401, 0.0
    %v440 = vmax.f32 %v404, 0.0
    %v441 = vmax.f32 %v409, 0.0
    %v442 = vmax.f32 %v412, 0.0
    %v443 = vmax.f32 %v417, 0.0
    %v444 = vmax.f32 %v420, 0.0
    %v445 = vmax.f32 %v425, 0.0
    %v446 = vmax.f32 %v428, 0.0
    %v447 = vpack.c.bf16 %v432, %v431
    %v448 = vpack.c.bf16 %v434, %v433
    %v449 = vpack.c.bf16 %v436, %v435
    %v450 = vpack.c.bf16 %v438, %v437
    %v451 = vpack.c.bf16 %v440, %v439
    %v452 = vpack.c.bf16 %v442, %v441
    %v453 = vpack.c.bf16 %v444, %v443
    %v454 = vpack.c.bf16 %v446, %v445
    %455 = vst [vmem:[#allocation3] sm:$0xff] %v447
    %456 = vst [vmem:[#allocation3 + $0x8] sm:$0xff] %v448
    %457 = vst [vmem:[#allocation3 + $0x10] sm:$0xff] %v449
    %458 = vst [vmem:[#allocation3 + $0x18] sm:$0xff] %v450
    %459 = vst [vmem:[#allocation3 + $0x20] sm:$0xff] %v451
    %460 = vst [vmem:[#allocation3 + $0x28] sm:$0xff] %v452
    %461 = vst [vmem:[#allocation3 + $0x30] sm:$0xff] %v453
    %462 = vst [vmem:[#allocation3 + $0x38] sm:$0xff] %v454
    %v463 = vld [vmem:[#allocation2] sm:$0xff]
    %v464 = vld [vmem:[#allocation2 + $0x8] sm:$0xff]
    %v465 = vld [vmem:[#allocation2 + $0x10] sm:$0xff]
    %v466 = vld [vmem:[#allocation2 + $0x18] sm:$0xff]
    %v467 = vld [vmem:[#allocation2 + $0x20] sm:$0xff]
    %v468 = vld [vmem:[#allocation2 + $0x28] sm:$0xff]
    %v469 = vld [vmem:[#allocation2 + $0x30] sm:$0xff]
    %v470 = vld [vmem:[#allocation2 + $0x38] sm:$0xff]
    %v471 = vld [vmem:[#allocation3] sm:$0xff]
    %v472 = vld [vmem:[#allocation3 + $0x8] sm:$0xff]
    %v473 = vld [vmem:[#allocation3 + $0x10] sm:$0xff]
    %v474 = vld [vmem:[#allocation3 + $0x18] sm:$0xff]
    %v475 = vld [vmem:[#allocation3 + $0x20] sm:$0xff]
    %v476 = vld [vmem:[#allocation3 + $0x28] sm:$0xff]
    %v477 = vld [vmem:[#allocation3 + $0x30] sm:$0xff]
    %v478 = vld [vmem:[#allocation3 + $0x38] sm:$0xff]
    %s479 = scalar_lea.vmem %s2, 64
    %v480 = vld [vmem:[%s479] sm:$0xf]
    %v481 = vld [vmem:[%s479 + $0x4] sm:$0xf]
    %v482 = vld [vmem:[%s479 + $0x8] sm:$0xf]
    %v483 = vld [vmem:[%s479 + $0xc] sm:$0xf]
    %v484 = vld [vmem:[%s479 + $0x10] sm:$0xf]
    %v485 = vld [vmem:[%s479 + $0x14] sm:$0xf]
    %v486 = vld [vmem:[%s479 + $0x18] sm:$0xf]
    %v487 = vld [vmem:[%s479 + $0x1c] sm:$0xf]
    %v488 = vld [vmem:[%s479 + $0x20] sm:$0xf]
    %v489 = vld [vmem:[%s479 + $0x24] sm:$0xf]
    %v490 = vld [vmem:[%s479 + $0x28] sm:$0xf]
    %v491 = vld [vmem:[%s479 + $0x2c] sm:$0xf]
    %v492 = vld [vmem:[%s479 + $0x30] sm:$0xf]
    %v493 = vld [vmem:[%s479 + $0x34] sm:$0xf]
    %v494 = vld [vmem:[%s479 + $0x38] sm:$0xf]
    %v495 = vld [vmem:[%s479 + $0x3c] sm:$0xf]
    %v512 = vunpack.c.l.b16 %v480
    %v513 = vunpack.c.l.b16 %v481
    %v514 = vunpack.c.l.b16 %v482
    %v515 = vunpack.c.l.b16 %v483
    %v516 = vunpack.c.l.b16 %v484
    %v517 = vunpack.c.l.b16 %v485
    %v518 = vunpack.c.l.b16 %v486
    %v519 = vunpack.c.l.b16 %v487
    %v520 = vunpack.c.l.b16 %v488
    %v521 = vunpack.c.l.b16 %v489
    %v522 = vunpack.c.l.b16 %v490
    %v523 = vunpack.c.l.b16 %v491
    %v524 = vunpack.c.l.b16 %v492
    %v525 = vunpack.c.l.b16 %v493
    %v526 = vunpack.c.l.b16 %v494
    %v527 = vunpack.c.l.b16 %v495
    %v528 = vpack.c.b16 %v513, %v512
    %v529 = vpack.c.b16 %v515, %v514
    %v530 = vpack.c.b16 %v517, %v516
    %v531 = vpack.c.b16 %v519, %v518
    %v532 = vpack.c.b16 %v521, %v520
    %v533 = vpack.c.b16 %v523, %v522
    %v534 = vpack.c.b16 %v525, %v524
    %v535 = vpack.c.b16 %v527, %v526
    %544 = vmatprep.subr.bf16.mxu0 0
    %545 = vmatpush1.bf16.msra.mxu0 %v528
    %546 = vmatprep.subr.bf16.mxu0 0
    %547 = vmatpush1.bf16.msra.mxu0 %v529
    %548 = vmatprep.subr.bf16.mxu0 0
    %549 = vmatpush1.bf16.msra.mxu0 %v530
    %550 = vmatprep.subr.bf16.mxu0 0
    %551 = vmatpush1.bf16.msra.mxu0 %v531
    %552 = vmatprep.subr.bf16.mxu0 0
    %553 = vmatpush1.bf16.msra.mxu0 %v532
    %554 = vmatprep.subr.bf16.mxu0 0
    %555 = vmatpush1.bf16.msra.mxu0 %v533
    %556 = vmatprep.subr.bf16.mxu0 0
    %557 = vmatpush1.bf16.msra.mxu0 %v534
    %558 = vmatprep.subr.bf16.mxu0 0
    %559 = vmatpush1.bf16.msra.mxu0 %v535
    %560 = vmatprep.subr.bf16.mxu0 0
    %561 = vmatpush1.bf16.msra.mxu0 0
    %562 = vmatprep.subr.bf16.mxu0 0
    %563 = vmatpush1.bf16.msra.mxu0 0
    %564 = vmatprep.subr.bf16.mxu0 0
    %565 = vmatpush1.bf16.msra.mxu0 0
    %566 = vmatprep.subr.bf16.mxu0 0
    %567 = vmatpush1.bf16.msra.mxu0 0
    %568 = vmatprep.subr.bf16.mxu0 0
    %569 = vmatpush1.bf16.msra.mxu0 0
    %570 = vmatprep.subr.bf16.mxu0 0
    %571 = vmatpush1.bf16.msra.mxu0 0
    %572 = vmatprep.subr.bf16.mxu0 0
    %573 = vmatpush1.bf16.msra.mxu0 0
    %574 = vmatprep.subr.bf16.mxu0 0
    %575 = vmatpush1.bf16.msra.mxu0 0
    %576 = vmatprep.mubr.bf16.mxu0 0
    %577 = vmatmul.mubr.bf16.gmra.mrb[0].mxu0 %v471
    %v578 = vpop.f32.mrb[0].mxu0
    %v579 = vadd.f32 0.0, %v578
    %v580 = vpop.f32.mrb[0].mxu0
    %v581 = vpop.f32.mrb[0].mxu0
    %v582 = vadd.f32 0.0, %v581
    %v583 = vpop.f32.mrb[0].mxu0
    %584 = vmatprep.mubr.bf16.mxu0 0
    %585 = vmatmul.mubr.bf16.gmra.mrb[0].mxu0 %v472
    %v586 = vpop.f32.mrb[0].mxu0
    %v587 = vadd.f32 0.0, %v586
    %v588 = vpop.f32.mrb[0].mxu0
    %v589 = vpop.f32.mrb[0].mxu0
    %v590 = vadd.f32 0.0, %v589
    %v591 = vpop.f32.mrb[0].mxu0
    %592 = vmatprep.mubr.bf16.mxu0 0
    %593 = vmatmul.mubr.bf16.gmra.mrb[0].mxu0 %v473
    %v594 = vpop.f32.mrb[0].mxu0
    %v595 = vadd.f32 0.0, %v594
    %v596 = vpop.f32.mrb[0].mxu0
    %v597 = vpop.f32.mrb[0].mxu0
    %v598 = vadd.f32 0.0, %v597
    %v599 = vpop.f32.mrb[0].mxu0
    %600 = vmatprep.mubr.bf16.mxu0 0
    %601 = vmatmul.mubr.bf16.gmra.mrb[0].mxu0 %v474
    %v602 = vpop.f32.mrb[0].mxu0
    %v603 = vadd.f32 0.0, %v602
    %v604 = vpop.f32.mrb[0].mxu0
    %v605 = vpop.f32.mrb[0].mxu0
    %v606 = vadd.f32 0.0, %v605
    %v607 = vpop.f32.mrb[0].mxu0
    %608 = vmatprep.mubr.bf16.mxu0 0
    %609 = vmatmul.mubr.bf16.gmra.mrb[0].mxu0 %v475
    %v610 = vpop.f32.mrb[0].mxu0
    %v611 = vadd.f32 0.0, %v610
    %v612 = vpop.f32.mrb[0].mxu0
    %v613 = vpop.f32.mrb[0].mxu0
    %v614 = vadd.f32 0.0, %v613
    %v615 = vpop.f32.mrb[0].mxu0
    %616 = vmatprep.mubr.bf16.mxu0 0
    %617 = vmatmul.mubr.bf16.gmra.mrb[0].mxu0 %v476
    %v618 = vpop.f32.mrb[0].mxu0
    %v619 = vadd.f32 0.0, %v618
    %v620 = vpop.f32.mrb[0].mxu0
    %v621 = vpop.f32.mrb[0].mxu0
    %v622 = vadd.f32 0.0, %v621
    %v623 = vpop.f32.mrb[0].mxu0
    %624 = vmatprep.mubr.bf16.mxu0 0
    %625 = vmatmul.mubr.bf16.gmra.mrb[0].mxu0 %v477
    %v626 = vpop.f32.mrb[0].mxu0
    %v627 = vadd.f32 0.0, %v626
    %v628 = vpop.f32.mrb[0].mxu0
    %v629 = vpop.f32.mrb[0].mxu0
    %v630 = vadd.f32 0.0, %v629
    %v631 = vpop.f32.mrb[0].mxu0
    %632 = vmatprep.mubr.bf16.mxu0 0
    %633 = vmatmul.mubr.bf16.gmra.mrb[0].mxu0 %v478
    %v634 = vpop.f32.mrb[0].mxu0
    %v635 = vadd.f32 0.0, %v634
    %v636 = vpop.f32.mrb[0].mxu0
    %v637 = vpop.f32.mrb[0].mxu0
    %v638 = vadd.f32 0.0, %v637
    %v639 = vpop.f32.mrb[0].mxu0
    %640 = vdwg.mxu0
    %v641 = vpack.c.bf16 %v582, %v579
    %v642 = vpack.c.bf16 %v590, %v587
    %v643 = vpack.c.bf16 %v598, %v595
    %v644 = vpack.c.bf16 %v606, %v603
    %v645 = vpack.c.bf16 %v614, %v611
    %v646 = vpack.c.bf16 %v622, %v619
    %v647 = vpack.c.bf16 %v630, %v627
    %v648 = vpack.c.bf16 %v638, %v635
    %v649 = vld [vmem:[%s4 + $0x1] sm:$0x1]
    %v650 = vlaneseq
    %v651 = vshrl.u32 %v650, 7
    %v652 = vsub.s32 0, %v651
    %v653 = vrot.slane %v649, %v652
    %654 = vmatprep.subr.bf16.mxu0 0
    %655 = vmatpush1.bf16.msra.mxu0 %v641
    %656 = vmatprep.subr.bf16.mxu0 0
    %657 = vmatpush1.bf16.msra.mxu0 %v642
    %658 = vmatprep.subr.bf16.mxu0 0
    %659 = vmatpush1.bf16.msra.mxu0 %v643
    %660 = vmatprep.subr.bf16.mxu0 0
    %661 = vmatpush1.bf16.msra.mxu0 %v644
    %662 = vmatprep.subr.bf16.mxu0 0
    %663 = vmatpush1.bf16.msra.mxu0 %v645
    %664 = vmatprep.subr.bf16.mxu0 0
    %665 = vmatpush1.bf16.msra.mxu0 %v646
    %666 = vmatprep.subr.bf16.mxu0 0
    %667 = vmatpush1.bf16.msra.mxu0 %v647
    %668 = vmatprep.subr.bf16.mxu0 0
    %669 = vmatpush1.bf16.msra.mxu0 %v648
    %670 = vmatprep.subr.bf16.mxu0 0
    %671 = vmatpush1.bf16.msra.mxu0 0
    %672 = vmatprep.subr.bf16.mxu0 0
    %673 = vmatpush1.bf16.msra.mxu0 0
    %674 = vmatprep.subr.bf16.mxu0 0
    %675 = vmatpush1.bf16.msra.mxu0 0
    %676 = vmatprep.subr.bf16.mxu0 0
    %677 = vmatpush1.bf16.msra.mxu0 0
    %678 = vmatprep.subr.bf16.mxu0 0
    %679 = vmatpush1.bf16.msra.mxu0 0
    %680 = vmatprep.subr.bf16.mxu0 0
    %681 = vmatpush1.bf16.msra.mxu0 0
    %682 = vmatprep.subr.bf16.mxu0 0
    %683 = vmatpush1.bf16.msra.mxu0 0
    %684 = vmatprep.subr.bf16.mxu0 0
    %685 = vmatpush1.bf16.msra.mxu0 0
    %686 = vmatprep.mubr.bf16.mxu0 0
    %687 = vmatmul.mubr.bf16.gmra.mrb[0].mxu0 %v463
    %v688 = vpop.f32.mrb[0].mxu0
    %v689 = vadd.f32 %v653, %v688
    %v690 = vpop.f32.mrb[0].mxu0
    %v691 = vpop.f32.mrb[0].mxu0
    %v692 = vadd.f32 %v653, %v691
    %v693 = vpop.f32.mrb[0].mxu0
    %694 = vmatprep.mubr.bf16.mxu0 0
    %695 = vmatmul.mubr.bf16.gmra.mrb[0].mxu0 %v464
    %v696 = vpop.f32.mrb[0].mxu0
    %v697 = vadd.f32 %v653, %v696
    %v698 = vpop.f32.mrb[0].mxu0
    %v699 = vpop.f32.mrb[0].mxu0
    %v700 = vadd.f32 %v653, %v699
    %v701 = vpop.f32.mrb[0].mxu0
    %702 = vmatprep.mubr.bf16.mxu0 0
    %703 = vmatmul.mubr.bf16.gmra.mrb[0].mxu0 %v465
    %v704 = vpop.f32.mrb[0].mxu0
    %v705 = vadd.f32 %v653, %v704
    %v706 = vpop.f32.mrb[0].mxu0
    %v707 = vpop.f32.mrb[0].mxu0
    %v708 = vadd.f32 %v653, %v707
    %v709 = vpop.f32.mrb[0].mxu0
    %710 = vmatprep.mubr.bf16.mxu0 0
    %711 = vmatmul.mubr.bf16.gmra.mrb[0].mxu0 %v466
    %v712 = vpop.f32.mrb[0].mxu0
    %v713 = vadd.f32 %v653, %v712
    %v714 = vpop.f32.mrb[0].mxu0
    %v715 = vpop.f32.mrb[0].mxu0
    %v716 = vadd.f32 %v653, %v715
    %v717 = vpop.f32.mrb[0].mxu0
    %718 = vmatprep.mubr.bf16.mxu0 0
    %719 = vmatmul.mubr.bf16.gmra.mrb[0].mxu0 %v467
    %v720 = vpop.f32.mrb[0].mxu0
    %v721 = vadd.f32 %v653, %v720
    %v722 = vpop.f32.mrb[0].mxu0
    %v723 = vpop.f32.mrb[0].mxu0
    %v724 = vadd.f32 %v653, %v723
    %v725 = vpop.f32.mrb[0].mxu0
    %726 = vmatprep.mubr.bf16.mxu0 0
    %727 = vmatmul.mubr.bf16.gmra.mrb[0].mxu0 %v468
    %v728 = vpop.f32.mrb[0].mxu0
    %v729 = vadd.f32 %v653, %v728
    %v730 = vpop.f32.mrb[0].mxu0
    %v731 = vpop.f32.mrb[0].mxu0
    %v732 = vadd.f32 %v653, %v731
    %v733 = vpop.f32.mrb[0].mxu0
    %734 = vmatprep.mubr.bf16.mxu0 0
    %735 = vmatmul.mubr.bf16.gmra.mrb[0].mxu0 %v469
    %v736 = vpop.f32.mrb[0].mxu0
    %v737 = vadd.f32 %v653, %v736
    %v738 = vpop.f32.mrb[0].mxu0
    %v739 = vpop.f32.mrb[0].mxu0
    %v740 = vadd.f32 %v653, %v739
    %v741 = vpop.f32.mrb[0].mxu0
    %742 = vmatprep.mubr.bf16.mxu0 0
    %743 = vmatmul.mubr.bf16.gmra.mrb[0].mxu0 %v470
    %v744 = vpop.f32.mrb[0].mxu0
    %v745 = vadd.f32 %v653, %v744
    %v746 = vpop.f32.mrb[0].mxu0
    %v747 = vpop.f32.mrb[0].mxu0
    %v748 = vadd.f32 %v653, %v747
    %v749 = vpop.f32.mrb[0].mxu0
    %750 = vdwg.mxu0
    %v751 = vpack.c.bf16 %v692, %v689
    %v752 = vpack.c.bf16 %v700, %v697
    %v753 = vpack.c.bf16 %v708, %v705
    %v754 = vpack.c.bf16 %v716, %v713
    %v755 = vpack.c.bf16 %v724, %v721
    %v756 = vpack.c.bf16 %v732, %v729
    %v757 = vpack.c.bf16 %v740, %v737
    %v758 = vpack.c.bf16 %v748, %v745
    %v759 = vld [vmem:[%s3] sm:$0xff]
    %v760 = vld [vmem:[%s3 + $0x8] sm:$0xff]
    %v761 = vld [vmem:[%s3 + $0x10] sm:$0xff]
    %v762 = vld [vmem:[%s3 + $0x18] sm:$0xff]
    %v763 = vld [vmem:[%s3 + $0x20] sm:$0xff]
    %v764 = vld [vmem:[%s3 + $0x28] sm:$0xff]
    %v765 = vld [vmem:[%s3 + $0x30] sm:$0xff]
    %v766 = vld [vmem:[%s3 + $0x38] sm:$0xff]
    %v767 = vld [vmem:[%s3 + $0x40] sm:$0xff]
    %v768 = vld [vmem:[%s3 + $0x48] sm:$0xff]
    %v769 = vld [vmem:[%s3 + $0x50] sm:$0xff]
    %v770 = vld [vmem:[%s3 + $0x58] sm:$0xff]
    %v771 = vld [vmem:[%s3 + $0x60] sm:$0xff]
    %v772 = vld [vmem:[%s3 + $0x68] sm:$0xff]
    %v773 = vld [vmem:[%s3 + $0x70] sm:$0xff]
    %v774 = vld [vmem:[%s3 + $0x78] sm:$0xff]
    %v791 = vunpack.c.l.b16 %v759
    %v792 = vunpack.c.h.b16 %v759
    %v793 = vunpack.c.l.b16 %v760
    %v794 = vunpack.c.h.b16 %v760
    %v795 = vunpack.c.l.b16 %v761
    %v796 = vunpack.c.h.b16 %v761
    %v797 = vunpack.c.l.b16 %v762
    %v798 = vunpack.c.h.b16 %v762
    %v799 = vunpack.c.l.b16 %v763
    %v800 = vunpack.c.h.b16 %v763
    %v801 = vunpack.c.l.b16 %v764
    %v802 = vunpack.c.h.b16 %v764
    %v803 = vunpack.c.l.b16 %v765
    %v804 = vunpack.c.h.b16 %v765
    %v805 = vunpack.c.l.b16 %v766
    %v806 = vunpack.c.h.b16 %v766
    %v807 = vunpack.c.l.b16 %v767
    %v808 = vunpack.c.h.b16 %v767
    %v809 = vunpack.c.l.b16 %v768
    %v810 = vunpack.c.h.b16 %v768
    %v811 = vunpack.c.l.b16 %v769
    %v812 = vunpack.c.h.b16 %v769
    %v813 = vunpack.c.l.b16 %v770
    %v814 = vunpack.c.h.b16 %v770
    %v815 = vunpack.c.l.b16 %v771
    %v816 = vunpack.c.h.b16 %v771
    %v817 = vunpack.c.l.b16 %v772
    %v818 = vunpack.c.h.b16 %v772
    %v819 = vunpack.c.l.b16 %v773
    %v820 = vunpack.c.h.b16 %v773
    %v821 = vunpack.c.l.b16 %v774
    %v822 = vunpack.c.h.b16 %v774
    %v823 = vpack.c.b16 %v793, %v791
    %v824 = vpack.c.b16 %v794, %v792
    %v825 = vpack.c.b16 %v797, %v795
    %v826 = vpack.c.b16 %v798, %v796
    %v827 = vpack.c.b16 %v801, %v799
    %v828 = vpack.c.b16 %v802, %v800
    %v829 = vpack.c.b16 %v805, %v803
    %v830 = vpack.c.b16 %v806, %v804
    %v831 = vpack.c.b16 %v809, %v807
    %v832 = vpack.c.b16 %v810, %v808
    %v833 = vpack.c.b16 %v813, %v811
    %v834 = vpack.c.b16 %v814, %v812
    %v835 = vpack.c.b16 %v817, %v815
    %v836 = vpack.c.b16 %v818, %v816
    %v837 = vpack.c.b16 %v821, %v819
    %v838 = vpack.c.b16 %v822, %v820
    %855 = vmatprep.subr.bf16.mxu0 %v824
    %856 = vmatpush1.bf16.msra.mxu0 %v823
    %857 = vmatprep.subr.bf16.mxu0 %v826
    %858 = vmatpush1.bf16.msra.mxu0 %v825
    %859 = vmatprep.subr.bf16.mxu0 %v828
    %860 = vmatpush1.bf16.msra.mxu0 %v827
    %861 = vmatprep.subr.bf16.mxu0 %v830
    %862 = vmatpush1.bf16.msra.mxu0 %v829
    %863 = vmatprep.subr.bf16.mxu0 %v832
    %864 = vmatpush1.bf16.msra.mxu0 %v831
    %865 = vmatprep.subr.bf16.mxu0 %v834
    %866 = vmatpush1.bf16.msra.mxu0 %v833
    %867 = vmatprep.subr.bf16.mxu0 %v836
    %868 = vmatpush1.bf16.msra.mxu0 %v835
    %869 = vmatprep.subr.bf16.mxu0 %v838
    %870 = vmatpush1.bf16.msra.mxu0 %v837
    %871 = vmatprep.subr.bf16.mxu0 0
    %872 = vmatpush1.bf16.msra.mxu0 0
    %873 = vmatprep.subr.bf16.mxu0 0
    %874 = vmatpush1.bf16.msra.mxu0 0
    %875 = vmatprep.subr.bf16.mxu0 0
    %876 = vmatpush1.bf16.msra.mxu0 0
    %877 = vmatprep.subr.bf16.mxu0 0
    %878 = vmatpush1.bf16.msra.mxu0 0
    %879 = vmatprep.subr.bf16.mxu0 0
    %880 = vmatpush1.bf16.msra.mxu0 0
    %881 = vmatprep.subr.bf16.mxu0 0
    %882 = vmatpush1.bf16.msra.mxu0 0
    %883 = vmatprep.subr.bf16.mxu0 0
    %884 = vmatpush1.bf16.msra.mxu0 0
    %885 = vmatprep.subr.bf16.mxu0 0
    %886 = vmatpush1.bf16.msra.mxu0 0
    %887 = vmatprep.mubr.bf16.mxu0 0
    %888 = vmatmul.mubr.bf16.gmra.mrb[0].mxu0 %v751
    %v889 = vpop.f32.mrb[0].mxu0
    %v890 = vadd.f32 0.0, %v889
    %v891 = vpop.f32.mrb[0].mxu0
    %v892 = vadd.f32 0.0, %v891
    %v893 = vpop.f32.mrb[0].mxu0
    %v894 = vadd.f32 0.0, %v893
    %v895 = vpop.f32.mrb[0].mxu0
    %v896 = vadd.f32 0.0, %v895
    %897 = vmatprep.mubr.bf16.mxu0 0
    %898 = vmatmul.mubr.bf16.gmra.mrb[0].mxu0 %v752
    %v899 = vpop.f32.mrb[0].mxu0
    %v900 = vadd.f32 0.0, %v899
    %v901 = vpop.f32.mrb[0].mxu0
    %v902 = vadd.f32 0.0, %v901
    %v903 = vpop.f32.mrb[0].mxu0
    %v904 = vadd.f32 0.0, %v903
    %v905 = vpop.f32.mrb[0].mxu0
    %v906 = vadd.f32 0.0, %v905
    %907 = vmatprep.mubr.bf16.mxu0 0
    %908 = vmatmul.mubr.bf16.gmra.mrb[0].mxu0 %v753
    %v909 = vpop.f32.mrb[0].mxu0
    %v910 = vadd.f32 0.0, %v909
    %v911 = vpop.f32.mrb[0].mxu0
    %v912 = vadd.f32 0.0, %v911
    %v913 = vpop.f32.mrb[0].mxu0
    %v914 = vadd.f32 0.0, %v913
    %v915 = vpop.f32.mrb[0].mxu0
    %v916 = vadd.f32 0.0, %v915
    %917 = vmatprep.mubr.bf16.mxu0 0
    %918 = vmatmul.mubr.bf16.gmra.mrb[0].mxu0 %v754
    %v919 = vpop.f32.mrb[0].mxu0
    %v920 = vadd.f32 0.0, %v919
    %v921 = vpop.f32.mrb[0].mxu0
    %v922 = vadd.f32 0.0, %v921
    %v923 = vpop.f32.mrb[0].mxu0
    %v924 = vadd.f32 0.0, %v923
    %v925 = vpop.f32.mrb[0].mxu0
    %v926 = vadd.f32 0.0, %v925
    %927 = vmatprep.mubr.bf16.mxu0 0
    %928 = vmatmul.mubr.bf16.gmra.mrb[0].mxu0 %v755
    %v929 = vpop.f32.mrb[0].mxu0
    %v930 = vadd.f32 0.0, %v929
    %v931 = vpop.f32.mrb[0].mxu0
    %v932 = vadd.f32 0.0, %v931
    %v933 = vpop.f32.mrb[0].mxu0
    %v934 = vadd.f32 0.0, %v933
    %v935 = vpop.f32.mrb[0].mxu0
    %v936 = vadd.f32 0.0, %v935
    %937 = vmatprep.mubr.bf16.mxu0 0
    %938 = vmatmul.mubr.bf16.gmra.mrb[0].mxu0 %v756
    %v939 = vpop.f32.mrb[0].mxu0
    %v940 = vadd.f32 0.0, %v939
    %v941 = vpop.f32.mrb[0].mxu0
    %v942 = vadd.f32 0.0, %v941
    %v943 = vpop.f32.mrb[0].mxu0
    %v944 = vadd.f32 0.0, %v943
    %v945 = vpop.f32.mrb[0].mxu0
    %v946 = vadd.f32 0.0, %v945
    %947 = vmatprep.mubr.bf16.mxu0 0
    %948 = vmatmul.mubr.bf16.gmra.mrb[0].mxu0 %v757
    %v949 = vpop.f32.mrb[0].mxu0
    %v950 = vadd.f32 0.0, %v949
    %v951 = vpop.f32.mrb[0].mxu0
    %v952 = vadd.f32 0.0, %v951
    %v953 = vpop.f32.mrb[0].mxu0
    %v954 = vadd.f32 0.0, %v953
    %v955 = vpop.f32.mrb[0].mxu0
    %v956 = vadd.f32 0.0, %v955
    %957 = vmatprep.mubr.bf16.mxu0 0
    %958 = vmatmul.mubr.bf16.gmra.mrb[0].mxu0 %v758
    %v959 = vpop.f32.mrb[0].mxu0
    %v960 = vadd.f32 0.0, %v959
    %v961 = vpop.f32.mrb[0].mxu0
    %v962 = vadd.f32 0.0, %v961
    %v963 = vpop.f32.mrb[0].mxu0
    %v964 = vadd.f32 0.0, %v963
    %v965 = vpop.f32.mrb[0].mxu0
    %v966 = vadd.f32 0.0, %v965
    %967 = vdwg.mxu0
    %v968 = vpack.c.bf16 %v894, %v890
    %v969 = vpack.c.bf16 %v896, %v892
    %v970 = vpack.c.bf16 %v904, %v900
    %v971 = vpack.c.bf16 %v906, %v902
    %v972 = vpack.c.bf16 %v914, %v910
    %v973 = vpack.c.bf16 %v916, %v912
    %v974 = vpack.c.bf16 %v924, %v920
    %v975 = vpack.c.bf16 %v926, %v922
    %v976 = vpack.c.bf16 %v934, %v930
    %v977 = vpack.c.bf16 %v936, %v932
    %v978 = vpack.c.bf16 %v944, %v940
    %v979 = vpack.c.bf16 %v946, %v942
    %v980 = vpack.c.bf16 %v954, %v950
    %v981 = vpack.c.bf16 %v956, %v952
    %v982 = vpack.c.bf16 %v964, %v960
    %v983 = vpack.c.bf16 %v966, %v962
    %v984 = vld [vmem:[%s5] sm:$0x3]
    %v986 = vlaneseq
    %v987 = vshrl.u32 %v986, 7
    %v988 = vsub.s32 0, %v987
    %v989 = vrot.slane %v984, %v988
    %v990 = vlaneseq
    %v991 = vshrl.u32 %v990, 7
    %v992 = vsub.s32 1, %v991
    %v993 = vrot.slane %v984, %v992
    %996 = vmatprep.subr.bf16.mxu0 %v969
    %997 = vmatpush1.bf16.msra.mxu0 %v968
    %998 = vmatprep.subr.bf16.mxu0 %v971
    %999 = vmatpush1.bf16.msra.mxu0 %v970
    %1000 = vmatprep.subr.bf16.mxu0 %v973
    %1001 = vmatpush1.bf16.msra.mxu0 %v972
    %1002 = vmatprep.subr.bf16.mxu0 %v975
    %1003 = vmatpush1.bf16.msra.mxu0 %v974
    %1004 = vmatprep.subr.bf16.mxu0 %v977
    %1005 = vmatpush1.bf16.msra.mxu0 %v976
    %1006 = vmatprep.subr.bf16.mxu0 %v979
    %1007 = vmatpush1.bf16.msra.mxu0 %v978
    %1008 = vmatprep.subr.bf16.mxu0 %v981
    %1009 = vmatpush1.bf16.msra.mxu0 %v980
    %1010 = vmatprep.subr.bf16.mxu0 %v983
    %1011 = vmatpush1.bf16.msra.mxu0 %v982
    %1012 = vmatprep.subr.bf16.mxu0 0
    %1013 = vmatpush1.bf16.msra.mxu0 0
    %1014 = vmatprep.subr.bf16.mxu0 0
    %1015 = vmatpush1.bf16.msra.mxu0 0
    %1016 = vmatprep.subr.bf16.mxu0 0
    %1017 = vmatpush1.bf16.msra.mxu0 0
    %1018 = vmatprep.subr.bf16.mxu0 0
    %1019 = vmatpush1.bf16.msra.mxu0 0
    %1020 = vmatprep.subr.bf16.mxu0 0
    %1021 = vmatpush1.bf16.msra.mxu0 0
    %1022 = vmatprep.subr.bf16.mxu0 0
    %1023 = vmatpush1.bf16.msra.mxu0 0
    %1024 = vmatprep.subr.bf16.mxu0 0
    %1025 = vmatpush1.bf16.msra.mxu0 0
    %1026 = vmatprep.subr.bf16.mxu0 0
    %1027 = vmatpush1.bf16.msra.mxu0 0
    %1028 = vmatprep.mubr.bf16.mxu0 0
    %1029 = vmatmul.mubr.bf16.gmra.mrb[0].mxu0 %v463
    %v1030 = vpop.f32.mrb[0].mxu0
    %v1031 = vadd.f32 %v989, %v1030
    %v1032 = vpop.f32.mrb[0].mxu0
    %v1033 = vadd.f32 %v993, %v1032
    %v1034 = vpop.f32.mrb[0].mxu0
    %v1035 = vadd.f32 %v989, %v1034
    %v1036 = vpop.f32.mrb[0].mxu0
    %v1037 = vadd.f32 %v993, %v1036
    %1038 = vmatprep.mubr.bf16.mxu0 0
    %1039 = vmatmul.mubr.bf16.gmra.mrb[0].mxu0 %v464
    %v1040 = vpop.f32.mrb[0].mxu0
    %v1041 = vadd.f32 %v989, %v1040
    %v1042 = vpop.f32.mrb[0].mxu0
    %v1043 = vadd.f32 %v993, %v1042
    %v1044 = vpop.f32.mrb[0].mxu0
    %v1045 = vadd.f32 %v989, %v1044
    %v1046 = vpop.f32.mrb[0].mxu0
    %v1047 = vadd.f32 %v993, %v1046
    %1048 = vmatprep.mubr.bf16.mxu0 0
    %1049 = vmatmul.mubr.bf16.gmra.mrb[0].mxu0 %v465
    %v1050 = vpop.f32.mrb[0].mxu0
    %v1051 = vadd.f32 %v989, %v1050
    %v1052 = vpop.f32.mrb[0].mxu0
    %v1053 = vadd.f32 %v993, %v1052
    %v1054 = vpop.f32.mrb[0].mxu0
    %v1055 = vadd.f32 %v989, %v1054
    %v1056 = vpop.f32.mrb[0].mxu0
    %v1057 = vadd.f32 %v993, %v1056
    %1058 = vmatprep.mubr.bf16.mxu0 0
    %1059 = vmatmul.mubr.bf16.gmra.mrb[0].mxu0 %v466
    %v1060 = vpop.f32.mrb[0].mxu0
    %v1061 = vadd.f32 %v989, %v1060
    %v1062 = vpop.f32.mrb[0].mxu0
    %v1063 = vadd.f32 %v993, %v1062
    %v1064 = vpop.f32.mrb[0].mxu0
    %v1065 = vadd.f32 %v989, %v1064
    %v1066 = vpop.f32.mrb[0].mxu0
    %v1067 = vadd.f32 %v993, %v1066
    %1068 = vmatprep.mubr.bf16.mxu0 0
    %1069 = vmatmul.mubr.bf16.gmra.mrb[0].mxu0 %v467
    %v1070 = vpop.f32.mrb[0].mxu0
    %v1071 = vadd.f32 %v989, %v1070
    %v1072 = vpop.f32.mrb[0].mxu0
    %v1073 = vadd.f32 %v993, %v1072
    %v1074 = vpop.f32.mrb[0].mxu0
    %v1075 = vadd.f32 %v989, %v1074
    %v1076 = vpop.f32.mrb[0].mxu0
    %v1077 = vadd.f32 %v993, %v1076
    %1078 = vmatprep.mubr.bf16.mxu0 0
    %1079 = vmatmul.mubr.bf16.gmra.mrb[0].mxu0 %v468
    %v1080 = vpop.f32.mrb[0].mxu0
    %v1081 = vadd.f32 %v989, %v1080
    %v1082 = vpop.f32.mrb[0].mxu0
    %v1083 = vadd.f32 %v993, %v1082
    %v1084 = vpop.f32.mrb[0].mxu0
    %v1085 = vadd.f32 %v989, %v1084
    %v1086 = vpop.f32.mrb[0].mxu0
    %v1087 = vadd.f32 %v993, %v1086
    %1088 = vmatprep.mubr.bf16.mxu0 0
    %1089 = vmatmul.mubr.bf16.gmra.mrb[0].mxu0 %v469
    %v1090 = vpop.f32.mrb[0].mxu0
    %v1091 = vadd.f32 %v989, %v1090
    %v1092 = vpop.f32.mrb[0].mxu0
    %v1093 = vadd.f32 %v993, %v1092
    %v1094 = vpop.f32.mrb[0].mxu0
    %v1095 = vadd.f32 %v989, %v1094
    %v1096 = vpop.f32.mrb[0].mxu0
    %v1097 = vadd.f32 %v993, %v1096
    %1098 = vmatprep.mubr.bf16.mxu0 0
    %1099 = vmatmul.mubr.bf16.gmra.mrb[0].mxu0 %v470
    %v1100 = vpop.f32.mrb[0].mxu0
    %v1101 = vadd.f32 %v989, %v1100
    %v1102 = vpop.f32.mrb[0].mxu0
    %v1103 = vadd.f32 %v993, %v1102
    %v1104 = vpop.f32.mrb[0].mxu0
    %v1105 = vadd.f32 %v989, %v1104
    %v1106 = vpop.f32.mrb[0].mxu0
    %v1107 = vadd.f32 %v993, %v1106
    %1108 = vdwg.mxu0
    %v1109 = vmax.f32 %v1031, 0.0
    %v1110 = vmax.f32 %v1035, 0.0
    %v1111 = vmax.f32 %v1041, 0.0
    %v1112 = vmax.f32 %v1045, 0.0
    %v1113 = vmax.f32 %v1051, 0.0
    %v1114 = vmax.f32 %v1055, 0.0
    %v1115 = vmax.f32 %v1061, 0.0
    %v1116 = vmax.f32 %v1065, 0.0
    %v1117 = vmax.f32 %v1071, 0.0
    %v1118 = vmax.f32 %v1075, 0.0
    %v1119 = vmax.f32 %v1081, 0.0
    %v1120 = vmax.f32 %v1085, 0.0
    %v1121 = vmax.f32 %v1091, 0.0
    %v1122 = vmax.f32 %v1095, 0.0
    %v1123 = vmax.f32 %v1101, 0.0
    %v1124 = vmax.f32 %v1105, 0.0
    %v1125 = vpack.c.bf16 %v1110, %v1109
    %v1126 = vpack.c.bf16 %v1112, %v1111
    %v1127 = vpack.c.bf16 %v1114, %v1113
    %v1128 = vpack.c.bf16 %v1116, %v1115
    %v1129 = vpack.c.bf16 %v1118, %v1117
    %v1130 = vpack.c.bf16 %v1120, %v1119
    %v1131 = vpack.c.bf16 %v1122, %v1121
    %v1132 = vpack.c.bf16 %v1124, %v1123
    %v1133 = vpack.c.bf16 %v1037, %v1033
    %v1134 = vpack.c.bf16 %v1047, %v1043
    %v1135 = vpack.c.bf16 %v1057, %v1053
    %v1136 = vpack.c.bf16 %v1067, %v1063
    %v1137 = vpack.c.bf16 %v1077, %v1073
    %v1138 = vpack.c.bf16 %v1087, %v1083
    %v1139 = vpack.c.bf16 %v1097, %v1093
    %v1140 = vpack.c.bf16 %v1107, %v1103
    %s1141 = scalar_lea.vmem %s2, 128
    %v1142 = vld [vmem:[%s1141] sm:$0xf]
    %v1143 = vld [vmem:[%s1141 + $0x4] sm:$0xf]
    %v1144 = vld [vmem:[%s1141 + $0x8] sm:$0xf]
    %v1145 = vld [vmem:[%s1141 + $0xc] sm:$0xf]
    %v1146 = vld [vmem:[%s1141 + $0x10] sm:$0xf]
    %v1147 = vld [vmem:[%s1141 + $0x14] sm:$0xf]
    %v1148 = vld [vmem:[%s1141 + $0x18] sm:$0xf]
    %v1149 = vld [vmem:[%s1141 + $0x1c] sm:$0xf]
    %v1150 = vld [vmem:[%s1141 + $0x20] sm:$0xf]
    %v1151 = vld [vmem:[%s1141 + $0x24] sm:$0xf]
    %v1152 = vld [vmem:[%s1141 + $0x28] sm:$0xf]
    %v1153 = vld [vmem:[%s1141 + $0x2c] sm:$0xf]
    %v1154 = vld [vmem:[%s1141 + $0x30] sm:$0xf]
    %v1155 = vld [vmem:[%s1141 + $0x34] sm:$0xf]
    %v1156 = vld [vmem:[%s1141 + $0x38] sm:$0xf]
    %v1157 = vld [vmem:[%s1141 + $0x3c] sm:$0xf]
    %v1174 = vunpack.c.l.b16 %v1142
    %v1175 = vunpack.c.l.b16 %v1143
    %v1176 = vunpack.c.l.b16 %v1144
    %v1177 = vunpack.c.l.b16 %v1145
    %v1178 = vunpack.c.l.b16 %v1146
    %v1179 = vunpack.c.l.b16 %v1147
    %v1180 = vunpack.c.l.b16 %v1148
    %v1181 = vunpack.c.l.b16 %v1149
    %v1182 = vunpack.c.l.b16 %v1150
    %v1183 = vunpack.c.l.b16 %v1151
    %v1184 = vunpack.c.l.b16 %v1152
    %v1185 = vunpack.c.l.b16 %v1153
    %v1186 = vunpack.c.l.b16 %v1154
    %v1187 = vunpack.c.l.b16 %v1155
    %v1188 = vunpack.c.l.b16 %v1156
    %v1189 = vunpack.c.l.b16 %v1157
    %v1190 = vpack.c.b16 %v1175, %v1174
    %v1191 = vpack.c.b16 %v1177, %v1176
    %v1192 = vpack.c.b16 %v1179, %v1178
    %v1193 = vpack.c.b16 %v1181, %v1180
    %v1194 = vpack.c.b16 %v1183, %v1182
    %v1195 = vpack.c.b16 %v1185, %v1184
    %v1196 = vpack.c.b16 %v1187, %v1186
    %v1197 = vpack.c.b16 %v1189, %v1188
    %1206 = vmatprep.subr.bf16.mxu0 0
    %1207 = vmatpush1.bf16.msra.mxu0 %v1190
    %1208 = vmatprep.subr.bf16.mxu0 0
    %1209 = vmatpush1.bf16.msra.mxu0 %v1191
    %1210 = vmatprep.subr.bf16.mxu0 0
    %1211 = vmatpush1.bf16.msra.mxu0 %v1192
    %1212 = vmatprep.subr.bf16.mxu0 0
    %1213 = vmatpush1.bf16.msra.mxu0 %v1193
    %1214 = vmatprep.subr.bf16.mxu0 0
    %1215 = vmatpush1.bf16.msra.mxu0 %v1194
    %1216 = vmatprep.subr.bf16.mxu0 0
    %1217 = vmatpush1.bf16.msra.mxu0 %v1195
    %1218 = vmatprep.subr.bf16.mxu0 0
    %1219 = vmatpush1.bf16.msra.mxu0 %v1196
    %1220 = vmatprep.subr.bf16.mxu0 0
    %1221 = vmatpush1.bf16.msra.mxu0 %v1197
    %1222 = vmatprep.subr.bf16.mxu0 0
    %1223 = vmatpush1.bf16.msra.mxu0 0
    %1224 = vmatprep.subr.bf16.mxu0 0
    %1225 = vmatpush1.bf16.msra.mxu0 0
    %1226 = vmatprep.subr.bf16.mxu0 0
    %1227 = vmatpush1.bf16.msra.mxu0 0
    %1228 = vmatprep.subr.bf16.mxu0 0
    %1229 = vmatpush1.bf16.msra.mxu0 0
    %1230 = vmatprep.subr.bf16.mxu0 0
    %1231 = vmatpush1.bf16.msra.mxu0 0
    %1232 = vmatprep.subr.bf16.mxu0 0
    %1233 = vmatpush1.bf16.msra.mxu0 0
    %1234 = vmatprep.subr.bf16.mxu0 0
    %1235 = vmatpush1.bf16.msra.mxu0 0
    %1236 = vmatprep.subr.bf16.mxu0 0
    %1237 = vmatpush1.bf16.msra.mxu0 0
    %1238 = vmatprep.mubr.bf16.mxu0 0
    %1239 = vmatmul.mubr.bf16.gmra.mrb[0].mxu0 %v1125
    %v1240 = vpop.f32.mrb[0].mxu0
    %v1241 = vadd.f32 0.0, %v1240
    %v1242 = vpop.f32.mrb[0].mxu0
    %v1243 = vpop.f32.mrb[0].mxu0
    %v1244 = vadd.f32 0.0, %v1243
    %v1245 = vpop.f32.mrb[0].mxu0
    %1246 = vmatprep.mubr.bf16.mxu0 0
    %1247 = vmatmul.mubr.bf16.gmra.mrb[0].mxu0 %v1126
    %v1248 = vpop.f32.mrb[0].mxu0
    %v1249 = vadd.f32 0.0, %v1248
    %v1250 = vpop.f32.mrb[0].mxu0
    %v1251 = vpop.f32.mrb[0].mxu0
    %v1252 = vadd.f32 0.0, %v1251
    %v1253 = vpop.f32.mrb[0].mxu0
    %1254 = vmatprep.mubr.bf16.mxu0 0
    %1255 = vmatmul.mubr.bf16.gmra.mrb[0].mxu0 %v1127
    %v1256 = vpop.f32.mrb[0].mxu0
    %v1257 = vadd.f32 0.0, %v1256
    %v1258 = vpop.f32.mrb[0].mxu0
    %v1259 = vpop.f32.mrb[0].mxu0
    %v1260 = vadd.f32 0.0, %v1259
    %v1261 = vpop.f32.mrb[0].mxu0
    %1262 = vmatprep.mubr.bf16.mxu0 0
    %1263 = vmatmul.mubr.bf16.gmra.mrb[0].mxu0 %v1128
    %v1264 = vpop.f32.mrb[0].mxu0
    %v1265 = vadd.f32 0.0, %v1264
    %v1266 = vpop.f32.mrb[0].mxu0
    %v1267 = vpop.f32.mrb[0].mxu0
    %v1268 = vadd.f32 0.0, %v1267
    %v1269 = vpop.f32.mrb[0].mxu0
    %1270 = vmatprep.mubr.bf16.mxu0 0
    %1271 = vmatmul.mubr.bf16.gmra.mrb[0].mxu0 %v1129
    %v1272 = vpop.f32.mrb[0].mxu0
    %v1273 = vadd.f32 0.0, %v1272
    %v1274 = vpop.f32.mrb[0].mxu0
    %v1275 = vpop.f32.mrb[0].mxu0
    %v1276 = vadd.f32 0.0, %v1275
    %v1277 = vpop.f32.mrb[0].mxu0
    %1278 = vmatprep.mubr.bf16.mxu0 0
    %1279 = vmatmul.mubr.bf16.gmra.mrb[0].mxu0 %v1130
    %v1280 = vpop.f32.mrb[0].mxu0
    %v1281 = vadd.f32 0.0, %v1280
    %v1282 = vpop.f32.mrb[0].mxu0
    %v1283 = vpop.f32.mrb[0].mxu0
    %v1284 = vadd.f32 0.0, %v1283
    %v1285 = vpop.f32.mrb[0].mxu0
    %1286 = vmatprep.mubr.bf16.mxu0 0
    %1287 = vmatmul.mubr.bf16.gmra.mrb[0].mxu0 %v1131
    %v1288 = vpop.f32.mrb[0].mxu0
    %v1289 = vadd.f32 0.0, %v1288
    %v1290 = vpop.f32.mrb[0].mxu0
    %v1291 = vpop.f32.mrb[0].mxu0
    %v1292 = vadd.f32 0.0, %v1291
    %v1293 = vpop.f32.mrb[0].mxu0
    %1294 = vmatprep.mubr.bf16.mxu0 0
    %1295 = vmatmul.mubr.bf16.gmra.mrb[0].mxu0 %v1132
    %v1296 = vpop.f32.mrb[0].mxu0
    %v1297 = vadd.f32 0.0, %v1296
    %v1298 = vpop.f32.mrb[0].mxu0
    %v1299 = vpop.f32.mrb[0].mxu0
    %v1300 = vadd.f32 0.0, %v1299
    %v1301 = vpop.f32.mrb[0].mxu0
    %1302 = vdwg.mxu0
    %v1303 = vpack.c.bf16 %v1244, %v1241
    %v1304 = vpack.c.bf16 %v1252, %v1249
    %v1305 = vpack.c.bf16 %v1260, %v1257
    %v1306 = vpack.c.bf16 %v1268, %v1265
    %v1307 = vpack.c.bf16 %v1276, %v1273
    %v1308 = vpack.c.bf16 %v1284, %v1281
    %v1309 = vpack.c.bf16 %v1292, %v1289
    %v1310 = vpack.c.bf16 %v1300, %v1297
    %v1311 = vld [vmem:[%s4 + $0x2] sm:$0x1]
    %v1312 = vlaneseq
    %v1313 = vshrl.u32 %v1312, 7
    %v1314 = vsub.s32 0, %v1313
    %v1315 = vrot.slane %v1311, %v1314
    %1316 = vmatprep.subr.bf16.mxu0 0
    %1317 = vmatpush1.bf16.msra.mxu0 %v1303
    %1318 = vmatprep.subr.bf16.mxu0 0
    %1319 = vmatpush1.bf16.msra.mxu0 %v1304
    %1320 = vmatprep.subr.bf16.mxu0 0
    %1321 = vmatpush1.bf16.msra.mxu0 %v1305
    %1322 = vmatprep.subr.bf16.mxu0 0
    %1323 = vmatpush1.bf16.msra.mxu0 %v1306
    %1324 = vmatprep.subr.bf16.mxu0 0
    %1325 = vmatpush1.bf16.msra.mxu0 %v1307
    %1326 = vmatprep.subr.bf16.mxu0 0
    %1327 = vmatpush1.bf16.msra.mxu0 %v1308
    %1328 = vmatprep.subr.bf16.mxu0 0
    %1329 = vmatpush1.bf16.msra.mxu0 %v1309
    %1330 = vmatprep.subr.bf16.mxu0 0
    %1331 = vmatpush1.bf16.msra.mxu0 %v1310
    %1332 = vmatprep.subr.bf16.mxu0 0
    %1333 = vmatpush1.bf16.msra.mxu0 0
    %1334 = vmatprep.subr.bf16.mxu0 0
    %1335 = vmatpush1.bf16.msra.mxu0 0
    %1336 = vmatprep.subr.bf16.mxu0 0
    %1337 = vmatpush1.bf16.msra.mxu0 0
    %1338 = vmatprep.subr.bf16.mxu0 0
    %1339 = vmatpush1.bf16.msra.mxu0 0
    %1340 = vmatprep.subr.bf16.mxu0 0
    %1341 = vmatpush1.bf16.msra.mxu0 0
    %1342 = vmatprep.subr.bf16.mxu0 0
    %1343 = vmatpush1.bf16.msra.mxu0 0
    %1344 = vmatprep.subr.bf16.mxu0 0
    %1345 = vmatpush1.bf16.msra.mxu0 0
    %1346 = vmatprep.subr.bf16.mxu0 0
    %1347 = vmatpush1.bf16.msra.mxu0 0
    %1348 = vmatprep.mubr.bf16.mxu0 0
    %1349 = vmatmul.mubr.bf16.gmra.mrb[0].mxu0 %v463
    %v1350 = vpop.f32.mrb[0].mxu0
    %v1351 = vadd.f32 %v1315, %v1350
    %v1352 = vpop.f32.mrb[0].mxu0
    %v1353 = vpop.f32.mrb[0].mxu0
    %v1354 = vadd.f32 %v1315, %v1353
    %v1355 = vpop.f32.mrb[0].mxu0
    %1356 = vmatprep.mubr.bf16.mxu0 0
    %1357 = vmatmul.mubr.bf16.gmra.mrb[0].mxu0 %v464
    %v1358 = vpop.f32.mrb[0].mxu0
    %v1359 = vadd.f32 %v1315, %v1358
    %v1360 = vpop.f32.mrb[0].mxu0
    %v1361 = vpop.f32.mrb[0].mxu0
    %v1362 = vadd.f32 %v1315, %v1361
    %v1363 = vpop.f32.mrb[0].mxu0
    %1364 = vmatprep.mubr.bf16.mxu0 0
    %1365 = vmatmul.mubr.bf16.gmra.mrb[0].mxu0 %v465
    %v1366 = vpop.f32.mrb[0].mxu0
    %v1367 = vadd.f32 %v1315, %v1366
    %v1368 = vpop.f32.mrb[0].mxu0
    %v1369 = vpop.f32.mrb[0].mxu0
    %v1370 = vadd.f32 %v1315, %v1369
    %v1371 = vpop.f32.mrb[0].mxu0
    %1372 = vmatprep.mubr.bf16.mxu0 0
    %1373 = vmatmul.mubr.bf16.gmra.mrb[0].mxu0 %v466
    %v1374 = vpop.f32.mrb[0].mxu0
    %v1375 = vadd.f32 %v1315, %v1374
    %v1376 = vpop.f32.mrb[0].mxu0
    %v1377 = vpop.f32.mrb[0].mxu0
    %v1378 = vadd.f32 %v1315, %v1377
    %v1379 = vpop.f32.mrb[0].mxu0
    %1380 = vmatprep.mubr.bf16.mxu0 0
    %1381 = vmatmul.mubr.bf16.gmra.mrb[0].mxu0 %v467
    %v1382 = vpop.f32.mrb[0].mxu0
    %v1383 = vadd.f32 %v1315, %v1382
    %v1384 = vpop.f32.mrb[0].mxu0
    %v1385 = vpop.f32.mrb[0].mxu0
    %v1386 = vadd.f32 %v1315, %v1385
    %v1387 = vpop.f32.mrb[0].mxu0
    %1388 = vmatprep.mubr.bf16.mxu0 0
    %1389 = vmatmul.mubr.bf16.gmra.mrb[0].mxu0 %v468
    %v1390 = vpop.f32.mrb[0].mxu0
    %v1391 = vadd.f32 %v1315, %v1390
    %v1392 = vpop.f32.mrb[0].mxu0
    %v1393 = vpop.f32.mrb[0].mxu0
    %v1394 = vadd.f32 %v1315, %v1393
    %v1395 = vpop.f32.mrb[0].mxu0
    %1396 = vmatprep.mubr.bf16.mxu0 0
    %1397 = vmatmul.mubr.bf16.gmra.mrb[0].mxu0 %v469
    %v1398 = vpop.f32.mrb[0].mxu0
    %v1399 = vadd.f32 %v1315, %v1398
    %v1400 = vpop.f32.mrb[0].mxu0
    %v1401 = vpop.f32.mrb[0].mxu0
    %v1402 = vadd.f32 %v1315, %v1401
    %v1403 = vpop.f32.mrb[0].mxu0
    %1404 = vmatprep.mubr.bf16.mxu0 0
    %1405 = vmatmul.mubr.bf16.gmra.mrb[0].mxu0 %v470
    %v1406 = vpop.f32.mrb[0].mxu0
    %v1407 = vadd.f32 %v1315, %v1406
    %v1408 = vpop.f32.mrb[0].mxu0
    %v1409 = vpop.f32.mrb[0].mxu0
    %v1410 = vadd.f32 %v1315, %v1409
    %v1411 = vpop.f32.mrb[0].mxu0
    %1412 = vdwg.mxu0
    %1413 = vst [vmem:[%s6] sm:$0xff] %v1351
    %1414 = vst [vmem:[%s6 + $0x8] sm:$0xff] %v1354
    %1415 = vst [vmem:[%s6 + $0x10] sm:$0xff] %v1359
    %1416 = vst [vmem:[%s6 + $0x18] sm:$0xff] %v1362
    %1417 = vst [vmem:[%s6 + $0x20] sm:$0xff] %v1367
    %1418 = vst [vmem:[%s6 + $0x28] sm:$0xff] %v1370
    %1419 = vst [vmem:[%s6 + $0x30] sm:$0xff] %v1375
    %1420 = vst [vmem:[%s6 + $0x38] sm:$0xff] %v1378
    %1421 = vst [vmem:[%s6 + $0x40] sm:$0xff] %v1383
    %1422 = vst [vmem:[%s6 + $0x48] sm:$0xff] %v1386
    %1423 = vst [vmem:[%s6 + $0x50] sm:$0xff] %v1391
    %1424 = vst [vmem:[%s6 + $0x58] sm:$0xff] %v1394
    %1425 = vst [vmem:[%s6 + $0x60] sm:$0xff] %v1399
    %1426 = vst [vmem:[%s6 + $0x68] sm:$0xff] %v1402
    %1427 = vst [vmem:[%s6 + $0x70] sm:$0xff] %v1407
    %1428 = vst [vmem:[%s6 + $0x78] sm:$0xff] %v1410
    %1429 = vst [vmem:[#allocation3] sm:$0xff] %v1133
    %1430 = vst [vmem:[#allocation3 + $0x8] sm:$0xff] %v1134
    %1431 = vst [vmem:[#allocation3 + $0x10] sm:$0xff] %v1135
    %1432 = vst [vmem:[#allocation3 + $0x18] sm:$0xff] %v1136
    %1433 = vst [vmem:[#allocation3 + $0x20] sm:$0xff] %v1137
    %1434 = vst [vmem:[#allocation3 + $0x28] sm:$0xff] %v1138
    %1435 = vst [vmem:[#allocation3 + $0x30] sm:$0xff] %v1139
    %1436 = vst [vmem:[#allocation3 + $0x38] sm:$0xff] %v1140
  $region25: #{conad_forward.1} parent=0 // pred_fallthru
    _
  %s1437 = smul.u32 0, 128
  %s1438 = sshra.s32 %s1437, 4
  %s1439 = sand.u32 %s1437, 15
  %s1440 = smul.addr %s1438, 8
  %s1441 = scalar_lea.vmem [#allocation3], %s1440
  %v1442 = vld [vmem:[%s1441] sm:$0xff]
  %v1443 = vld [vmem:[%s1441 + $0x8] sm:$0xff]
  %v1444 = vld [vmem:[%s1441 + $0x10] sm:$0xff]
  %v1445 = vld [vmem:[%s1441 + $0x18] sm:$0xff]
  %v1446 = vld [vmem:[%s1441 + $0x20] sm:$0xff]
  %v1447 = vld [vmem:[%s1441 + $0x28] sm:$0xff]
  %v1448 = vld [vmem:[%s1441 + $0x30] sm:$0xff]
  %v1449 = vld [vmem:[%s1441 + $0x38] sm:$0xff]
  %v1450 = vld [vmem:[#allocation3] sm:$0xff]
  %v1451 = vld [vmem:[#allocation3 + $0x8] sm:$0xff]
  %v1452 = vld [vmem:[#allocation3 + $0x10] sm:$0xff]
  %v1453 = vld [vmem:[#allocation3 + $0x18] sm:$0xff]
  %v1454 = vld [vmem:[#allocation3 + $0x20] sm:$0xff]
  %v1455 = vld [vmem:[#allocation3 + $0x28] sm:$0xff]
  %v1456 = vld [vmem:[#allocation3 + $0x30] sm:$0xff]
  %v1457 = vld [vmem:[#allocation3 + $0x38] sm:$0xff]
  %1458 = vmatprep.subr.bf16.mxu0 0
  %1459 = vmatpush1.bf16.xpose.msra.mxu0 %v1450
  %1460 = vmatprep.subr.bf16.mxu0 0
  %1461 = vmatpush1.bf16.xpose.msra.mxu0 %v1451
  %1462 = vmatprep.subr.bf16.mxu0 0
  %1463 = vmatpush1.bf16.xpose.msra.mxu0 %v1452
  %1464 = vmatprep.subr.bf16.mxu0 0
  %1465 = vmatpush1.bf16.xpose.msra.mxu0 %v1453
  %1466 = vmatprep.subr.bf16.mxu0 0
  %1467 = vmatpush1.bf16.xpose.msra.mxu0 %v1454
  %1468 = vmatprep.subr.bf16.mxu0 0
  %1469 = vmatpush1.bf16.xpose.msra.mxu0 %v1455
  %1470 = vmatprep.subr.bf16.mxu0 0
  %1471 = vmatpush1.bf16.xpose.msra.mxu0 %v1456
  %1472 = vmatprep.subr.bf16.mxu0 0
  %1473 = vmatpush1.bf16.xpose.msra.mxu0 %v1457
  %1474 = vmatprep.subr.bf16.mxu0 0
  %1475 = vmatpush1.bf16.xpose.msra.mxu0 0
  %1476 = vmatprep.subr.bf16.mxu0 0
  %1477 = vmatpush1.bf16.xpose.msra.mxu0 0
  %1478 = vmatprep.subr.bf16.mxu0 0
  %1479 = vmatpush1.bf16.xpose.msra.mxu0 0
  %1480 = vmatprep.subr.bf16.mxu0 0
  %1481 = vmatpush1.bf16.xpose.msra.mxu0 0
  %1482 = vmatprep.subr.bf16.mxu0 0
  %1483 = vmatpush1.bf16.xpose.msra.mxu0 0
  %1484 = vmatprep.subr.bf16.mxu0 0
  %1485 = vmatpush1.bf16.xpose.msra.mxu0 0
  %1486 = vmatprep.subr.bf16.mxu0 0
  %1487 = vmatpush1.bf16.xpose.msra.mxu0 0
  %1488 = vmatprep.subr.bf16.mxu0 0
  %1489 = vmatpush1.bf16.xpose.msra.mxu0 0
  %1490 = vmatprep.mubr.bf16.mxu0 0
  %1491 = vmatmul.mubr.bf16.gmra.mrb[0].mxu0 %v1442
  %v1492 = vpop.f32.mrb[0].mxu0
  %v1493 = vadd.f32 0.0, %v1492
  %v1494 = vpop.f32.mrb[0].mxu0
  %v1495 = vpop.f32.mrb[0].mxu0
  %v1496 = vadd.f32 0.0, %v1495
  %v1497 = vpop.f32.mrb[0].mxu0
  %1498 = vmatprep.mubr.bf16.mxu0 0
  %1499 = vmatmul.mubr.bf16.gmra.mrb[0].mxu0 %v1443
  %v1500 = vpop.f32.mrb[0].mxu0
  %v1501 = vadd.f32 0.0, %v1500
  %v1502 = vpop.f32.mrb[0].mxu0
  %v1503 = vpop.f32.mrb[0].mxu0
  %v1504 = vadd.f32 0.0, %v1503
  %v1505 = vpop.f32.mrb[0].mxu0
  %1506 = vmatprep.mubr.bf16.mxu0 0
  %1507 = vmatmul.mubr.bf16.gmra.mrb[0].mxu0 %v1444
  %v1508 = vpop.f32.mrb[0].mxu0
  %v1509 = vadd.f32 0.0, %v1508
  %v1510 = vpop.f32.mrb[0].mxu0
  %v1511 = vpop.f32.mrb[0].mxu0
  %v1512 = vadd.f32 0.0, %v1511
  %v1513 = vpop.f32.mrb[0].mxu0
  %1514 = vmatprep.mubr.bf16.mxu0 0
  %1515 = vmatmul.mubr.bf16.gmra.mrb[0].mxu0 %v1445
  %v1516 = vpop.f32.mrb[0].mxu0
  %v1517 = vadd.f32 0.0, %v1516
  %v1518 = vpop.f32.mrb[0].mxu0
  %v1519 = vpop.f32.mrb[0].mxu0
  %v1520 = vadd.f32 0.0, %v1519
  %v1521 = vpop.f32.mrb[0].mxu0
  %1522 = vmatprep.mubr.bf16.mxu0 0
  %1523 = vmatmul.mubr.bf16.gmra.mrb[0].mxu0 %v1446
  %v1524 = vpop.f32.mrb[0].mxu0
  %v1525 = vadd.f32 0.0, %v1524
  %v1526 = vpop.f32.mrb[0].mxu0
  %v1527 = vpop.f32.mrb[0].mxu0
  %v1528 = vadd.f32 0.0, %v1527
  %v1529 = vpop.f32.mrb[0].mxu0
  %1530 = vmatprep.mubr.bf16.mxu0 0
  %1531 = vmatmul.mubr.bf16.gmra.mrb[0].mxu0 %v1447
  %v1532 = vpop.f32.mrb[0].mxu0
  %v1533 = vadd.f32 0.0, %v1532
  %v1534 = vpop.f32.mrb[0].mxu0
  %v1535 = vpop.f32.mrb[0].mxu0
  %v1536 = vadd.f32 0.0, %v1535
  %v1537 = vpop.f32.mrb[0].mxu0
  %1538 = vmatprep.mubr.bf16.mxu0 0
  %1539 = vmatmul.mubr.bf16.gmra.mrb[0].mxu0 %v1448
  %v1540 = vpop.f32.mrb[0].mxu0
  %v1541 = vadd.f32 0.0, %v1540
  %v1542 = vpop.f32.mrb[0].mxu0
  %v1543 = vpop.f32.mrb[0].mxu0
  %v1544 = vadd.f32 0.0, %v1543
  %v1545 = vpop.f32.mrb[0].mxu0
  %1546 = vmatprep.mubr.bf16.mxu0 0
  %1547 = vmatmul.mubr.bf16.gmra.mrb[0].mxu0 %v1449
  %v1548 = vpop.f32.mrb[0].mxu0
  %v1549 = vadd.f32 0.0, %v1548
  %v1550 = vpop.f32.mrb[0].mxu0
  %v1551 = vpop.f32.mrb[0].mxu0
  %v1552 = vadd.f32 0.0, %v1551
  %v1553 = vpop.f32.mrb[0].mxu0
  %1554 = vdwg.mxu0
  %v1555 = vpack.c.bf16 %v1496, %v1493
  %v1556 = vpack.c.bf16 %v1504, %v1501
  %v1557 = vpack.c.bf16 %v1512, %v1509
  %v1558 = vpack.c.bf16 %v1520, %v1517
  %v1559 = vpack.c.bf16 %v1528, %v1525
  %v1560 = vpack.c.bf16 %v1536, %v1533
  %v1561 = vpack.c.bf16 %v1544, %v1541
  %v1562 = vpack.c.bf16 %v1552, %v1549
  %v1571 = vunpack.c.l.b16 %v1555
  %v1572 = vunpack.c.h.b16 %v1555
  %v1573 = vunpack.c.l.b16 %v1556
  %v1574 = vunpack.c.h.b16 %v1556
  %v1575 = vunpack.c.l.b16 %v1557
  %v1576 = vunpack.c.h.b16 %v1557
  %v1577 = vunpack.c.l.b16 %v1558
  %v1578 = vunpack.c.h.b16 %v1558
  %v1579 = vunpack.c.l.b16 %v1559
  %v1580 = vunpack.c.h.b16 %v1559
  %v1581 = vunpack.c.l.b16 %v1560
  %v1582 = vunpack.c.h.b16 %v1560
  %v1583 = vunpack.c.l.b16 %v1561
  %v1584 = vunpack.c.h.b16 %v1561
  %v1585 = vunpack.c.l.b16 %v1562
  %v1586 = vunpack.c.h.b16 %v1562
  %v1587 = vpack.c.b16 %v1571, %v1571
  %v1588 = vpack.c.b16 %v1572, %v1572
  %v1589 = vpack.c.b16 %v1573, %v1573
  %v1590 = vpack.c.b16 %v1574, %v1574
  %v1591 = vpack.c.b16 %v1575, %v1575
  %v1592 = vpack.c.b16 %v1576, %v1576
  %v1593 = vpack.c.b16 %v1577, %v1577
  %v1594 = vpack.c.b16 %v1578, %v1578
  %v1595 = vpack.c.b16 %v1579, %v1579
  %v1596 = vpack.c.b16 %v1580, %v1580
  %v1597 = vpack.c.b16 %v1581, %v1581
  %v1598 = vpack.c.b16 %v1582, %v1582
  %v1599 = vpack.c.b16 %v1583, %v1583
  %v1600 = vpack.c.b16 %v1584, %v1584
  %v1601 = vpack.c.b16 %v1585, %v1585
  %v1602 = vpack.c.b16 %v1586, %v1586
  %1619 = vst [vmem:[%s7] sm:$0xf] %v1587
  %1620 = vst [vmem:[%s7 + $0x4] sm:$0xf] %v1588
  %1621 = vst [vmem:[%s7 + $0x8] sm:$0xf] %v1589
  %1622 = vst [vmem:[%s7 + $0xc] sm:$0xf] %v1590
  %1623 = vst [vmem:[%s7 + $0x10] sm:$0xf] %v1591
  %1624 = vst [vmem:[%s7 + $0x14] sm:$0xf] %v1592
  %1625 = vst [vmem:[%s7 + $0x18] sm:$0xf] %v1593
  %1626 = vst [vmem:[%s7 + $0x1c] sm:$0xf] %v1594
  %1627 = vst [vmem:[%s7 + $0x20] sm:$0xf] %v1595
  %1628 = vst [vmem:[%s7 + $0x24] sm:$0xf] %v1596
  %1629 = vst [vmem:[%s7 + $0x28] sm:$0xf] %v1597
  %1630 = vst [vmem:[%s7 + $0x2c] sm:$0xf] %v1598
  %1631 = vst [vmem:[%s7 + $0x30] sm:$0xf] %v1599
  %1632 = vst [vmem:[%s7 + $0x34] sm:$0xf] %v1600
  %1633 = vst [vmem:[%s7 + $0x38] sm:$0xf] %v1601
  %1634 = vst [vmem:[%s7 + $0x3c] sm:$0xf] %v1602
  // Predicated region
  $region60: #{conad_forward.1} parent=0 // pred_check
    _
  $region61: #{conad_forward.1} parent=0 // pred_check_branch
    %1636 = sbr.rel (0) target = $region63
  $region62: #{conad_forward.1} parent=0 // pred_region
    _
  $region63: #{conad_forward.1} parent=0 // pred_fallthru
    _
  // Predicated region
  $region64: #{conad_forward.1} parent=0 // pred_check
    _
  $region65: #{conad_forward.1} parent=0 // pred_check_branch
    %1638 = sbr.rel (0) target = $region67
  $region66: #{conad_forward.1} parent=0 // pred_region
    _
  $region67: #{conad_forward.1} parent=0 // pred_fallthru
    _
  // Predicated region
  $region68: #{conad_forward.1} parent=0 // pred_check
    _
  $region69: #{conad_forward.1} parent=0 // pred_check_branch
    %1640 = sbr.rel (0) target = $region71
  $region70: #{conad_forward.1} parent=0 // pred_region
    _
  $region71: #{conad_forward.1} parent=0 // pred_fallthru
    _
  // Predicated region
  $region72: #{conad_forward.1} parent=0 // pred_check
    _
  $region73: #{conad_forward.1} parent=0 // pred_check_branch
    %1642 = sbr.rel (0) target = $region75
  $region74: #{conad_forward.1} parent=0 // pred_region
    _
  $region75: #{conad_forward.1} parent=0 // pred_fallthru
    _
  %1643 = vsyncmov [#allocation4]
  %s1644 = vpop.sfrf %1643
  %p1645 = scmp.eq.s32.totalorder %s1644, 0
  %p1646 = pneg %p1645
  %1648 = shalt.err (%p1646)

</llo_original>
